<compile_context>
chip_gen: v5e
topology: v5e:2x2
jax: 0.10.0
libtpu: 0.0.40
codegen_flags: <defaults>
</compile_context>

<pallas_src>
import functools

import jax
import jax.numpy as jnp
from jax.experimental import pallas as pl
from jax.experimental.pallas import tpu as pltpu


def _vq_kernel(x_ref, a_ref, ebd_ref, e2_ref, q_ref, ind_ref, sse_ref,
               *, bp, kp, chunk, n_chunks):
    """One grid step quantizes a tile of T tokens for BP packed batch elements.

    x_ref:   (BP*E,  T)  f32  packed input tokens (channels on sublanes)
    a_ref:   (BP*Kp, BP*E) f32  -2 * blockdiag(emb^T)       (resident constant)
    ebd_ref: (BP*E,  BP*Kp) f32  blockdiag(emb)              (resident constant)
    e2_ref:  (BP*Kp, 1)  f32  per-code ||e||^2 (+inf on pads, resident constant)
    q_ref:   (BP*E,  T)  f32  quantized tokens
    ind_ref: (BP,    T)  i32  nearest-code indices
    sse_ref: (1,     T)  f32  per-token sum of squared errors
    """
    a = a_ref[...]
    ebd = ebd_ref[...]
    e2 = e2_ref[...]

    def process(c0):
        x = x_ref[:, pl.ds(c0, chunk)]                                # (BP*E, C)
        # dist = -2 x.e_k + ||e_k||^2  (||x||^2 dropped: constant per token)
        xe = jnp.dot(a, x, preferred_element_type=jnp.float32,
                     precision=jax.lax.Precision.HIGHEST)             # (BP*Kp, C)
        d3 = (xe + e2).reshape(bp, kp, chunk)                         # (BP, Kp, C)
        # First-min index over the codebook (sublane) axis, like torch.min.
        mval = jnp.min(d3, axis=1, keepdims=True)                     # (BP, 1, C)
        iota = jax.lax.broadcasted_iota(jnp.int32, (bp, kp, chunk), 1)
        ind3 = jnp.min(jnp.where(d3 == mval, iota, kp),
                       axis=1, keepdims=True)                         # (BP, 1, C)
        # Gather nearest code columns via one-hot matmul (exact at HIGHEST).
        onehot = (iota == ind3).astype(jnp.float32).reshape(bp * kp, chunk)
        q = jnp.dot(ebd, onehot, preferred_element_type=jnp.float32,
                    precision=jax.lax.Precision.HIGHEST)              # (BP*E, C)

        q_ref[:, pl.ds(c0, chunk)] = q
        ind_ref[:, pl.ds(c0, chunk)] = ind3.reshape(bp, chunk).astype(jnp.int32)
        err = q - x
        sse_ref[:, pl.ds(c0, chunk)] = jnp.sum(err * err, axis=0, keepdims=True)

    if n_chunks == 1:
        process(0)
    else:
        def body(ci, carry):
            process(pl.multiple_of(ci * chunk, 128))
            return carry
        jax.lax.fori_loop(0, n_chunks, body, 0)


def _pick_bp(b, e):
    """Batch-packing factor: fold BP batches into sublanes so BP*E <= 8."""
    best = 1
    for d in range(1, min(b, 8) + 1):
        if b % d == 0 and d * e <= 8:
            best = d
    return best


def _divisor_tile(total, cap):
    """Largest multiple of 128 that divides `total` and is <= cap (floor 128)."""
    t = max(128, (min(cap, total) // 128) * 128)
    while t > 128 and total % t:
        t -= 128
    return t


def _block_diag(m, bp):
    if bp == 1:
        return m
    r, c = m.shape
    out = jnp.zeros((bp * r, bp * c), m.dtype)
    for p in range(bp):
        out = out.at[p * r:(p + 1) * r, p * c:(p + 1) * c].set(m)
    return out


@functools.partial(jax.jit, static_argnames=("max_token_tile", "max_chunk"))
def vector_quantization_forward(x_nchw, embedding, *,
                                max_token_tile=2048, max_chunk=512):
    """Forward pass of VectorQuantization (eval semantics).

    x_nchw:    (B, E, H, W) float32
    embedding: (E, K)       float32
    Returns (quantize (B,E,H,W), diff scalar, embedding_ind (B,W,H) int32).
    """
    B, E, H, W = x_nchw.shape
    K = embedding.shape[1]
    HW = H * W

    # ---- hoisted codebook constants (computed once per call) ----
    kp = ((K + 7) // 8) * 8
    emb = embedding.astype(jnp.float32)
    e2 = jnp.sum(emb * emb, axis=0)
    if kp != K:
        emb = jnp.pad(emb, ((0, 0), (0, kp - K)))
        e2 = jnp.pad(e2, (0, kp - K), constant_values=jnp.inf)

    # ---- batch packing into sublanes ----
    bp = _pick_bp(B, E)
    bg = B // bp                  # batch groups = grid axis 0
    bpe = bp * E
    bkp = bp * kp

    a_bd = _block_diag(-2.0 * emb.T, bp)        # (BP*Kp, BP*E)
    emb_bd = _block_diag(emb, bp)               # (BP*E, BP*Kp)
    e2_bd = jnp.tile(e2, bp).reshape(bkp, 1)    # (BP*Kp, 1)

    # ---- token tiling (lane axis) ----
    hw_pad = ((HW + 127) // 128) * 128
    # Keep ~6 live (BP*Kp, T) f32 temporaries within a conservative budget
    # (v5e 16 MiB scoped default / v7x 64 MiB physical).
    budget = 8 * 1024 * 1024
    cap = max(128, (budget // (6 * 4 * bkp)) // 128 * 128)
    t = _divisor_tile(hw_pad, min(cap, max_token_tile))
    if bg * (hw_pad // t) < 2 and hw_pad >= 256:
        t = _divisor_tile(hw_pad, hw_pad // 2)  # v7x: >=2 balanced parallel steps
    n_t = hw_pad // t

    chunk = _divisor_tile(t, max_chunk)         # in-kernel lane chunk (vregs)
    n_chunks = t // chunk

    # ---- fold input: (B,E,HW) -> (B/BP, BP*E, HW_pad); only the pad copies ----
    x_flat = x_nchw.astype(jnp.float32).reshape(B, E, HW)
    if hw_pad != HW:
        x_flat = jnp.pad(x_flat, ((0, 0), (0, 0), (0, hw_pad - HW)))
    x_fold = x_flat.reshape(bg, bpe, hw_pad)

    # Explicit VMEM limit with headroom, derived from the chosen (T, Kp, BP).
    est = 4 * (4 * bpe * t + 2 * bp * t + 2 * t
               + 4 * bkp * bpe + 2 * bkp + 6 * bkp * chunk)
    vmem_limit = int(min(64 * 1024 * 1024, max(32 * 1024 * 1024, 2 * est)))

    kernel = functools.partial(_vq_kernel, bp=bp, kp=kp,
                               chunk=chunk, n_chunks=n_chunks)

    q_fold, ind_fold, sse_tok = pl.pallas_call(
        kernel,
        out_shape=(
            jax.ShapeDtypeStruct((bg, bpe, hw_pad), jnp.float32),  # quantized
            jax.ShapeDtypeStruct((bg, bp, hw_pad), jnp.int32),     # indices
            jax.ShapeDtypeStruct((bg, 1, hw_pad), jnp.float32),    # per-token SSE
        ),
        grid_spec=pltpu.PrefetchScalarGridSpec(
            num_scalar_prefetch=0,
            grid=(bg, n_t),
            in_specs=[
                pl.BlockSpec((None, bpe, t), lambda b, s: (b, 0, s)),  # x tile
                pl.BlockSpec((bkp, bpe), lambda b, s: (0, 0)),   # -2*blkdiag(E^T)
                pl.BlockSpec((bpe, bkp), lambda b, s: (0, 0)),   # blkdiag(E)
                pl.BlockSpec((bkp, 1), lambda b, s: (0, 0)),     # ||e||^2
            ],
            out_specs=[
                pl.BlockSpec((None, bpe, t), lambda b, s: (b, 0, s)),  # q
                pl.BlockSpec((None, bp, t), lambda b, s: (b, 0, s)),   # ind
                pl.BlockSpec((None, 1, t), lambda b, s: (b, 0, s)),    # sse row
            ],
        ),
        compiler_params=pltpu.CompilerParams(
            dimension_semantics=("parallel", "parallel"),
            vmem_limit_bytes=vmem_limit,
        ),
    )(x_fold, a_bd, emb_bd, e2_bd)

    # ---- unfold / finalize ----
    if hw_pad != HW:
        q_fold = q_fold[:, :, :HW]
        ind_fold = ind_fold[:, :, :HW]
        sse_tok = sse_tok[:, :, :HW]

    quantize = q_fold.reshape(B, E, H, W)                      # NCHW order kept
    # diff = F.mse_loss(quantize, input): mean over all B*H*W*E elements.
    diff = jnp.sum(sse_tok) / jnp.float32(B * E * HW)
    # Kernel token order within HW is (h, w); module returns indices as (B, W, H).
    embedding_ind = jnp.transpose(ind_fold.reshape(B, H, W), (0, 2, 1))

    # Straight-through estimator: forward value == quantize.
    return quantize, diff, embedding_ind


def _reference(x_nchw, embedding):
    """Pure-JAX reference mirroring the PyTorch forward (eval semantics)."""
    B, E, H, W = x_nchw.shape
    x_t = jnp.transpose(x_nchw, (0, 3, 2, 1))             # (B, W, H, E)
    flat = x_t.reshape(-1, E)
    dist = (jnp.sum(flat ** 2, axis=1, keepdims=True)
            - 2.0 * jnp.dot(flat, embedding,
                            precision=jax.lax.Precision.HIGHEST)
            + jnp.sum(embedding ** 2, axis=0, keepdims=True))
    ind = jnp.argmin(dist, axis=1)
    q = jnp.take(embedding.T, ind, axis=0)
    diff = jnp.mean((q - flat) ** 2)
    quantize = jnp.transpose(q.reshape(B, W, H, E), (0, 3, 2, 1))
    return quantize, diff, ind.reshape(B, W, H).astype(jnp.int32)


if __name__ == "__main__":
    # Module hyperparameters (synthetic, small) -- primary check.
    embedding_size = 4     # = channel dim E
    num_embedding = 32     # codebook size K
    B, H, W = 2, 16, 16

    key = jax.random.PRNGKey(0)
    k_emb, k_x = jax.random.split(key)
    embedding = jax.random.normal(k_emb, (embedding_size, num_embedding),
                                  dtype=jnp.float32)
    x = jax.random.normal(k_x, (B, embedding_size, H, W), dtype=jnp.float32)

    quantize, diff, embedding_ind = vector_quantization_forward(x, embedding)
    jax.block_until_ready((quantize, diff, embedding_ind))

    q_ref, d_ref, i_ref = _reference(x, embedding)
    assert quantize.shape == (B, embedding_size, H, W)
    assert embedding_ind.shape == (B, W, H)
    assert jnp.allclose(quantize, q_ref, atol=1e-5), "quantize mismatch"
    assert jnp.allclose(diff, d_ref, rtol=1e-4, atol=1e-5), "diff mismatch"
    assert jnp.array_equal(embedding_ind, i_ref), "index mismatch"

    # Secondary check: exercises K padding (K=20 -> Kp=24), H*W padding
    # (143 -> 256 lanes), batch packing (BP=2) and the in-kernel chunk loop.
    B2, H2, W2, K2 = 4, 11, 13, 20
    k_emb2, k_x2 = jax.random.split(jax.random.PRNGKey(1))
    emb2 = jax.random.normal(k_emb2, (embedding_size, K2), dtype=jnp.float32)
    x2 = jax.random.normal(k_x2, (B2, embedding_size, H2, W2), dtype=jnp.float32)
    q2, d2, i2 = vector_quantization_forward(x2, emb2, max_chunk=128)
    jax.block_until_ready((q2, d2, i2))
    q2r, d2r, i2r = _reference(x2, emb2)
    assert jnp.allclose(q2, q2r, atol=1e-5), "quantize mismatch (padded case)"
    assert jnp.allclose(d2, d2r, rtol=1e-4, atol=1e-5), "diff mismatch (padded case)"
    assert jnp.array_equal(i2, i2r), "index mismatch (padded case)"

    print("KERNEL_OK")
</pallas_src>

<mosaic_0001>
module attributes {stable_mosaic.version = 11 : i64} {
  func.func @_vq_kernel(%arg0: i32, %arg1: i32, %arg2: memref<1x8x128xf32, #tpu.memory_space<vmem>>, %arg3: memref<64x8xf32, #tpu.memory_space<vmem>>, %arg4: memref<8x64xf32, #tpu.memory_space<vmem>>, %arg5: memref<64x1xf32, #tpu.memory_space<vmem>>, %arg6: memref<1x8x128xf32, #tpu.memory_space<vmem>>, %arg7: memref<1x2x128xi32, #tpu.memory_space<vmem>>, %arg8: memref<1x1x128xf32, #tpu.memory_space<vmem>>) attributes {dimension_semantics = [#tpu.dimension_semantics<parallel>, #tpu.dimension_semantics<parallel>], iteration_bounds = array<i64: 1, 2>, scalar_prefetch = 0 : i64, scratch_operands = 0 : i64, tpu.core_type = #tpu.core_type<tc>, window_params = [{transform_indices = @transform_0, window_bounds = array<i64: 1, 8, 128>}, {pipeline_mode = #tpu.pipeline_mode<synchronous>, transform_indices = @transform_1, window_bounds = array<i64: 64, 8>}, {pipeline_mode = #tpu.pipeline_mode<synchronous>, transform_indices = @transform_2, window_bounds = array<i64: 8, 64>}, {pipeline_mode = #tpu.pipeline_mode<synchronous>, transform_indices = @transform_3, window_bounds = array<i64: 64, 1>}, {transform_indices = @transform_4, window_bounds = array<i64: 1, 8, 128>}, {transform_indices = @transform_5, window_bounds = array<i64: 1, 2, 128>}, {transform_indices = @transform_6, window_bounds = array<i64: 1, 1, 128>}]} {
    %c0 = arith.constant 0 : index
    %c0_0 = arith.constant 0 : index
    %0 = vector.load %arg3[%c0, %c0_0] : memref<64x8xf32, #tpu.memory_space<vmem>>, vector<64x8xf32>
    %c0_1 = arith.constant 0 : index
    %c0_2 = arith.constant 0 : index
    %1 = vector.load %arg4[%c0_1, %c0_2] : memref<8x64xf32, #tpu.memory_space<vmem>>, vector<8x64xf32>
    %c0_3 = arith.constant 0 : index
    %c0_4 = arith.constant 0 : index
    %2 = vector.load %arg5[%c0_3, %c0_4] : memref<64x1xf32, #tpu.memory_space<vmem>>, vector<64x1xf32>
    %c0_5 = arith.constant 0 : index
    %c0_6 = arith.constant 0 : index
    %c0_7 = arith.constant 0 : index
    %3 = vector.load %arg2[%c0_5, %c0_6, %c0_7] : memref<1x8x128xf32, #tpu.memory_space<vmem>>, vector<1x8x128xf32>
    %4 = vector.shape_cast %3 : vector<1x8x128xf32> to vector<8x128xf32>
    %cst = arith.constant dense<0.000000e+00> : vector<64x128xf32>
    %5 = tpu.matmul %0, %4, %cst {dimension_numbers = #tpu.dot_dimension_numbers<[1], [0], [0], [1], [0, 0, 1, 1], [], []>, precision = #tpu.contract_precision<fp32>} : vector<64x8xf32>, vector<8x128xf32>, vector<64x128xf32> -> vector<64x128xf32>
    %6 = vector.broadcast %2 : vector<64x1xf32> to vector<64x128xf32>
    %7 = arith.addf %5, %6 : vector<64x128xf32>
    %8 = vector.shape_cast %7 : vector<64x128xf32> to vector<2x32x128xf32>
    %cst_8 = arith.constant dense<0x7F800000> : vector<2x128xf32>
    %9 = vector.multi_reduction <minimumf>, %8, %cst_8 [1] : vector<2x32x128xf32> to vector<2x128xf32>
    %10 = vector.shape_cast %9 : vector<2x128xf32> to vector<2x1x128xf32>
    %11 = tpu.iota {dimensions = array<i32: 1>} : vector<2x32x128xi32>
    %12 = vector.broadcast %10 : vector<2x1x128xf32> to vector<2x32x128xf32>
    %13 = arith.cmpf oeq, %8, %12 : vector<2x32x128xf32>
    %c32_i32 = arith.constant 32 : i32
    %14 = vector.broadcast %c32_i32 : i32 to vector<2x32x128xi32>
    %15 = arith.select %13, %11, %14 : vector<2x32x128xi1>, vector<2x32x128xi32>
    %cst_9 = arith.constant dense<2147483647> : vector<2x128xi32>
    %16 = vector.multi_reduction <minsi>, %15, %cst_9 [1] : vector<2x32x128xi32> to vector<2x128xi32>
    %17 = vector.shape_cast %16 : vector<2x128xi32> to vector<2x1x128xi32>
    %18 = vector.broadcast %17 : vector<2x1x128xi32> to vector<2x32x128xi32>
    %19 = arith.cmpi eq, %11, %18 : vector<2x32x128xi32>
    %20 = arith.extui %19 : vector<2x32x128xi1> to vector<2x32x128xi32>
    %21 = arith.sitofp %20 : vector<2x32x128xi32> to vector<2x32x128xf32>
    %22 = vector.shape_cast %21 : vector<2x32x128xf32> to vector<64x128xf32>
    %cst_10 = arith.constant dense<0.000000e+00> : vector<8x128xf32>
    %23 = tpu.matmul %1, %22, %cst_10 {dimension_numbers = #tpu.dot_dimension_numbers<[1], [0], [0], [1], [0, 0, 1, 1], [], []>, precision = #tpu.contract_precision<fp32>} : vector<8x64xf32>, vector<64x128xf32>, vector<8x128xf32> -> vector<8x128xf32>
    %c0_11 = arith.constant 0 : index
    %c0_12 = arith.constant 0 : index
    %c0_13 = arith.constant 0 : index
    %24 = vector.load %arg6[%c0_11, %c0_12, %c0_13] : memref<1x8x128xf32, #tpu.memory_space<vmem>>, vector<1x8x128xf32>
    %25 = vector.shape_cast %24 : vector<1x8x128xf32> to vector<8x128xf32>
    %26 = vector.shape_cast %23 : vector<8x128xf32> to vector<1x8x128xf32>
    tpu.vector_store %arg6[%c0_11, %c0_12, %c0_13], %26 {strides = array<i32>} : memref<1x8x128xf32, #tpu.memory_space<vmem>>, vector<1x8x128xf32>,
    %27 = vector.shape_cast %17 : vector<2x1x128xi32> to vector<2x128xi32>
    %c0_14 = arith.constant 0 : index
    %c0_15 = arith.constant 0 : index
    %c0_16 = arith.constant 0 : index
    %28 = vector.load %arg7[%c0_14, %c0_15, %c0_16] : memref<1x2x128xi32, #tpu.memory_space<vmem>>, vector<1x2x128xi32>
    %29 = vector.shape_cast %28 : vector<1x2x128xi32> to vector<2x128xi32>
    %30 = vector.shape_cast %27 : vector<2x128xi32> to vector<1x2x128xi32>
    tpu.vector_store %arg7[%c0_14, %c0_15, %c0_16], %30 {strides = array<i32>} : memref<1x2x128xi32, #tpu.memory_space<vmem>>, vector<1x2x128xi32>,
    %31 = arith.subf %23, %4 : vector<8x128xf32>
    %32 = arith.mulf %31, %31 : vector<8x128xf32>
    %cst_17 = arith.constant dense<0.000000e+00> : vector<128xf32>
    %33 = vector.multi_reduction <add>, %32, %cst_17 [0] : vector<8x128xf32> to vector<128xf32>
    %34 = vector.shape_cast %33 : vector<128xf32> to vector<1x128xf32>
    %c0_18 = arith.constant 0 : index
    %c0_19 = arith.constant 0 : index
    %c0_20 = arith.constant 0 : index
    %35 = vector.load %arg8[%c0_18, %c0_19, %c0_20] : memref<1x1x128xf32, #tpu.memory_space<vmem>>, vector<1x1x128xf32>
    %36 = vector.shape_cast %35 : vector<1x1x128xf32> to vector<1x128xf32>
    %37 = vector.shape_cast %34 : vector<1x128xf32> to vector<1x1x128xf32>
    tpu.vector_store %arg8[%c0_18, %c0_19, %c0_20], %37 {strides = array<i32>} : memref<1x1x128xf32, #tpu.memory_space<vmem>>, vector<1x1x128xf32>,
    return
  }
  func.func @transform_0(%arg0: i32, %arg1: i32) -> (i32, i32, i32) {
    %c0_i32 = arith.constant 0 : i32
    %c0_i32_0 = arith.constant 0 : i32
    return %arg0, %c0_i32, %arg1 : i32, i32, i32
  }
  func.func @transform_1(%arg0: i32, %arg1: i32) -> (i32, i32) {
    %c0_i32 = arith.constant 0 : i32
    %c0_i32_0 = arith.constant 0 : i32
    %c0_i32_1 = arith.constant 0 : i32
    return %c0_i32, %c0_i32_0 : i32, i32
  }
  func.func @transform_2(%arg0: i32, %arg1: i32) -> (i32, i32) {
    %c0_i32 = arith.constant 0 : i32
    %c0_i32_0 = arith.constant 0 : i32
    %c0_i32_1 = arith.constant 0 : i32
    return %c0_i32, %c0_i32_0 : i32, i32
  }
  func.func @transform_3(%arg0: i32, %arg1: i32) -> (i32, i32) {
    %c0_i32 = arith.constant 0 : i32
    %c0_i32_0 = arith.constant 0 : i32
    %c0_i32_1 = arith.constant 0 : i32
    return %c0_i32, %c0_i32_0 : i32, i32
  }
  func.func @transform_4(%arg0: i32, %arg1: i32) -> (i32, i32, i32) {
    %c0_i32 = arith.constant 0 : i32
    %c0_i32_0 = arith.constant 0 : i32
    return %arg0, %c0_i32, %arg1 : i32, i32, i32
  }
  func.func @transform_5(%arg0: i32, %arg1: i32) -> (i32, i32, i32) {
    %c0_i32 = arith.constant 0 : i32
    %c0_i32_0 = arith.constant 0 : i32
    return %arg0, %c0_i32, %arg1 : i32, i32, i32
  }
  func.func @transform_6(%arg0: i32, %arg1: i32) -> (i32, i32, i32) {
    %c0_i32 = arith.constant 0 : i32
    %c0_i32_0 = arith.constant 0 : i32
    return %arg0, %c0_i32, %arg1 : i32, i32, i32
  }
}

</mosaic_0001>

<llo_original>
// kernel: tile.8
$region0: #{tile.8}
  #allocation0 [shape = 's32[1]{0}', space=sflag, size = 0x4, scoped, tag = 'scoped memory for tile.8']
  %s0 = inlined_call_operand.vmem [shape: f32[32], index: 0, kind: input, shape index: {}]
  %s1 = inlined_call_operand.vmem [shape: f32[2,32], index: 1, kind: output, shape index: {}]
  // Predicated region
  $region2: #{tile.8} parent=0 // pred_check
    _
  $region3: #{tile.8} parent=0 // pred_check_branch
    %3 = sbr.rel (0) target = $region5
  $region4: #{tile.8} parent=0 // pred_region
    _
  $region5: #{tile.8} parent=0 // pred_fallthru
    _
  %v4 = vld [vmem:[%s0] ss:$0 sm:$0xff]
  %5 = vst [vmem:[%s1] sm:$0x3] %v4

// kernel: tile.0
$region0: #{tile.0}
  %s0 = inlined_call_operand.vmem [shape: f32[2,32], index: 0, kind: input, shape index: {}]
  %s1 = inlined_call_operand.vmem [shape: f32[64,1], index: 1, kind: output, shape index: {}]
  $region1: #{tile.0} parent=0
    #allocation0 [shape = 'u8[4096]{0}', space=vmem, size = 0x1000, scoped, tag = 'scoped mem for input reshape']
    %s3 = ssub.s32 4, 1
    %v4 = vld [vmem:[%s0] sm:%s3]
    %5 = vst [vmem:[#allocation0] sm:%s3] %v4
    %v6 = vld [vmem:[#allocation0] sm:$0x3]
    %vm7 = vcmask 7168
    %8 = vst.msk [vmem:[%s1] sm:$0x1] %vm7, %v6
    %s9 = scalar_lea.vmem %s1, 31
    %10 = vst.msk [vmem:[%s9] sm:$0x2] %vm7, %v6
    %v11 = vld [vmem:[#allocation0] sm:$0x3]
    %12 = vrot.lane.b32.xlu0 %v11, 127
    %v13 = vpop.permute.xlu0 %12
    %vm14 = vcmask 7168
    %s15 = scalar_lea.vmem %s1, 1
    %16 = vst.msk [vmem:[%s15] sm:$0x1] %vm14, %v13
    %s17 = scalar_lea.vmem %s1, 32
    %18 = vst.msk [vmem:[%s17] sm:$0x2] %vm14, %v13
    %v19 = vld [vmem:[#allocation0] sm:$0x3]
    %20 = vrot.lane.b32.xlu0 %v19, 126
    %v21 = vpop.permute.xlu0 %20
    %vm22 = vcmask 7168
    %s23 = scalar_lea.vmem %s1, 2
    %24 = vst.msk [vmem:[%s23] sm:$0x1] %vm22, %v21
    %s25 = scalar_lea.vmem %s1, 33
    %26 = vst.msk [vmem:[%s25] sm:$0x2] %vm22, %v21
    %v27 = vld [vmem:[#allocation0] sm:$0x3]
    %28 = vrot.lane.b32.xlu0 %v27, 125
    %v29 = vpop.permute.xlu0 %28
    %vm30 = vcmask 7168
    %s31 = scalar_lea.vmem %s1, 3
    %32 = vst.msk [vmem:[%s31] sm:$0x1] %vm30, %v29
    %s33 = scalar_lea.vmem %s1, 34
    %34 = vst.msk [vmem:[%s33] sm:$0x2] %vm30, %v29
    %v35 = vld [vmem:[#allocation0] sm:$0x3]
    %36 = vrot.lane.b32.xlu0 %v35, 124
    %v37 = vpop.permute.xlu0 %36
    %vm38 = vcmask 7168
    %s39 = scalar_lea.vmem %s1, 4
    %40 = vst.msk [vmem:[%s39] sm:$0x1] %vm38, %v37
    %s41 = scalar_lea.vmem %s1, 35
    %42 = vst.msk [vmem:[%s41] sm:$0x2] %vm38, %v37
    %v43 = vld [vmem:[#allocation0] sm:$0x3]
    %44 = vrot.lane.b32.xlu0 %v43, 123
    %v45 = vpop.permute.xlu0 %44
    %vm46 = vcmask 7168
    %s47 = scalar_lea.vmem %s1, 5
    %48 = vst.msk [vmem:[%s47] sm:$0x1] %vm46, %v45
    %s49 = scalar_lea.vmem %s1, 36
    %50 = vst.msk [vmem:[%s49] sm:$0x2] %vm46, %v45
    %v51 = vld [vmem:[#allocation0] sm:$0x3]
    %52 = vrot.lane.b32.xlu0 %v51, 122
    %v53 = vpop.permute.xlu0 %52
    %vm54 = vcmask 7168
    %s55 = scalar_lea.vmem %s1, 6
    %56 = vst.msk [vmem:[%s55] sm:$0x1] %vm54, %v53
    %s57 = scalar_lea.vmem %s1, 37
    %58 = vst.msk [vmem:[%s57] sm:$0x2] %vm54, %v53
    %v59 = vld [vmem:[#allocation0] sm:$0x3]
    %60 = vrot.lane.b32.xlu0 %v59, 121
    %v61 = vpop.permute.xlu0 %60
    %vm62 = vcmask 7168
    %s63 = scalar_lea.vmem %s1, 7
    %64 = vst.msk [vmem:[%s63] sm:$0x1] %vm62, %v61
    %s65 = scalar_lea.vmem %s1, 38
    %66 = vst.msk [vmem:[%s65] sm:$0x2] %vm62, %v61
    %v67 = vld [vmem:[#allocation0] sm:$0x3]
    %68 = vrot.lane.b32.xlu0 %v67, 120
    %v69 = vpop.permute.xlu0 %68
    %vm70 = vcmask 7168
    %s71 = scalar_lea.vmem %s1, 8
    %72 = vst.msk [vmem:[%s71] sm:$0x1] %vm70, %v69
    %s73 = scalar_lea.vmem %s1, 39
    %74 = vst.msk [vmem:[%s73] sm:$0x2] %vm70, %v69
    %v75 = vld [vmem:[#allocation0] sm:$0x3]
    %76 = vrot.lane.b32.xlu0 %v75, 119
    %v77 = vpop.permute.xlu0 %76
    %vm78 = vcmask 7168
    %s79 = scalar_lea.vmem %s1, 9
    %80 = vst.msk [vmem:[%s79] sm:$0x1] %vm78, %v77
    %s81 = scalar_lea.vmem %s1, 40
    %82 = vst.msk [vmem:[%s81] sm:$0x2] %vm78, %v77
    %v83 = vld [vmem:[#allocation0] sm:$0x3]
    %84 = vrot.lane.b32.xlu0 %v83, 118
    %v85 = vpop.permute.xlu0 %84
    %vm86 = vcmask 7168
    %s87 = scalar_lea.vmem %s1, 10
    %88 = vst.msk [vmem:[%s87] sm:$0x1] %vm86, %v85
    %s89 = scalar_lea.vmem %s1, 41
    %90 = vst.msk [vmem:[%s89] sm:$0x2] %vm86, %v85
    %v91 = vld [vmem:[#allocation0] sm:$0x3]
    %92 = vrot.lane.b32.xlu0 %v91, 117
    %v93 = vpop.permute.xlu0 %92
    %vm94 = vcmask 7168
    %s95 = scalar_lea.vmem %s1, 11
    %96 = vst.msk [vmem:[%s95] sm:$0x1] %vm94, %v93
    %s97 = scalar_lea.vmem %s1, 42
    %98 = vst.msk [vmem:[%s97] sm:$0x2] %vm94, %v93
    %v99 = vld [vmem:[#allocation0] sm:$0x3]
    %100 = vrot.lane.b32.xlu0 %v99, 116
    %v101 = vpop.permute.xlu0 %100
    %vm102 = vcmask 7168
    %s103 = scalar_lea.vmem %s1, 12
    %104 = vst.msk [vmem:[%s103] sm:$0x1] %vm102, %v101
    %s105 = scalar_lea.vmem %s1, 43
    %106 = vst.msk [vmem:[%s105] sm:$0x2] %vm102, %v101
    %v107 = vld [vmem:[#allocation0] sm:$0x3]
    %108 = vrot.lane.b32.xlu0 %v107, 115
    %v109 = vpop.permute.xlu0 %108
    %vm110 = vcmask 7168
    %s111 = scalar_lea.vmem %s1, 13
    %112 = vst.msk [vmem:[%s111] sm:$0x1] %vm110, %v109
    %s113 = scalar_lea.vmem %s1, 44
    %114 = vst.msk [vmem:[%s113] sm:$0x2] %vm110, %v109
    %v115 = vld [vmem:[#allocation0] sm:$0x3]
    %116 = vrot.lane.b32.xlu0 %v115, 114
    %v117 = vpop.permute.xlu0 %116
    %vm118 = vcmask 7168
    %s119 = scalar_lea.vmem %s1, 14
    %120 = vst.msk [vmem:[%s119] sm:$0x1] %vm118, %v117
    %s121 = scalar_lea.vmem %s1, 45
    %122 = vst.msk [vmem:[%s121] sm:$0x2] %vm118, %v117
    %v123 = vld [vmem:[#allocation0] sm:$0x3]
    %124 = vrot.lane.b32.xlu0 %v123, 113
    %v125 = vpop.permute.xlu0 %124
    %vm126 = vcmask 7168
    %s127 = scalar_lea.vmem %s1, 15
    %128 = vst.msk [vmem:[%s127] sm:$0x1] %vm126, %v125
    %s129 = scalar_lea.vmem %s1, 46
    %130 = vst.msk [vmem:[%s129] sm:$0x2] %vm126, %v125
    %v131 = vld [vmem:[#allocation0] sm:$0x3]
    %132 = vrot.lane.b32.xlu0 %v131, 112
    %v133 = vpop.permute.xlu0 %132
    %vm134 = vcmask 7168
    %s135 = scalar_lea.vmem %s1, 16
    %136 = vst.msk [vmem:[%s135] sm:$0x1] %vm134, %v133
    %s137 = scalar_lea.vmem %s1, 47
    %138 = vst.msk [vmem:[%s137] sm:$0x2] %vm134, %v133
    %v139 = vld [vmem:[#allocation0] sm:$0x3]
    %140 = vrot.lane.b32.xlu0 %v139, 111
    %v141 = vpop.permute.xlu0 %140
    %vm142 = vcmask 7168
    %s143 = scalar_lea.vmem %s1, 17
    %144 = vst.msk [vmem:[%s143] sm:$0x1] %vm142, %v141
    %s145 = scalar_lea.vmem %s1, 48
    %146 = vst.msk [vmem:[%s145] sm:$0x2] %vm142, %v141
    %v147 = vld [vmem:[#allocation0] sm:$0x3]
    %148 = vrot.lane.b32.xlu0 %v147, 110
    %v149 = vpop.permute.xlu0 %148
    %vm150 = vcmask 7168
    %s151 = scalar_lea.vmem %s1, 18
    %152 = vst.msk [vmem:[%s151] sm:$0x1] %vm150, %v149
    %s153 = scalar_lea.vmem %s1, 49
    %154 = vst.msk [vmem:[%s153] sm:$0x2] %vm150, %v149
    %v155 = vld [vmem:[#allocation0] sm:$0x3]
    %156 = vrot.lane.b32.xlu0 %v155, 109
    %v157 = vpop.permute.xlu0 %156
    %vm158 = vcmask 7168
    %s159 = scalar_lea.vmem %s1, 19
    %160 = vst.msk [vmem:[%s159] sm:$0x1] %vm158, %v157
    %s161 = scalar_lea.vmem %s1, 50
    %162 = vst.msk [vmem:[%s161] sm:$0x2] %vm158, %v157
    %v163 = vld [vmem:[#allocation0] sm:$0x3]
    %164 = vrot.lane.b32.xlu0 %v163, 108
    %v165 = vpop.permute.xlu0 %164
    %vm166 = vcmask 7168
    %s167 = scalar_lea.vmem %s1, 20
    %168 = vst.msk [vmem:[%s167] sm:$0x1] %vm166, %v165
    %s169 = scalar_lea.vmem %s1, 51
    %170 = vst.msk [vmem:[%s169] sm:$0x2] %vm166, %v165
    %v171 = vld [vmem:[#allocation0] sm:$0x3]
    %172 = vrot.lane.b32.xlu0 %v171, 107
    %v173 = vpop.permute.xlu0 %172
    %vm174 = vcmask 7168
    %s175 = scalar_lea.vmem %s1, 21
    %176 = vst.msk [vmem:[%s175] sm:$0x1] %vm174, %v173
    %s177 = scalar_lea.vmem %s1, 52
    %178 = vst.msk [vmem:[%s177] sm:$0x2] %vm174, %v173
    %v179 = vld [vmem:[#allocation0] sm:$0x3]
    %180 = vrot.lane.b32.xlu0 %v179, 106
    %v181 = vpop.permute.xlu0 %180
    %vm182 = vcmask 7168
    %s183 = scalar_lea.vmem %s1, 22
    %184 = vst.msk [vmem:[%s183] sm:$0x1] %vm182, %v181
    %s185 = scalar_lea.vmem %s1, 53
    %186 = vst.msk [vmem:[%s185] sm:$0x2] %vm182, %v181
    %v187 = vld [vmem:[#allocation0] sm:$0x3]
    %188 = vrot.lane.b32.xlu0 %v187, 105
    %v189 = vpop.permute.xlu0 %188
    %vm190 = vcmask 7168
    %s191 = scalar_lea.vmem %s1, 23
    %192 = vst.msk [vmem:[%s191] sm:$0x1] %vm190, %v189
    %s193 = scalar_lea.vmem %s1, 54
    %194 = vst.msk [vmem:[%s193] sm:$0x2] %vm190, %v189
    %v195 = vld [vmem:[#allocation0] sm:$0x3]
    %196 = vrot.lane.b32.xlu0 %v195, 104
    %v197 = vpop.permute.xlu0 %196
    %vm198 = vcmask 7168
    %s199 = scalar_lea.vmem %s1, 24
    %200 = vst.msk [vmem:[%s199] sm:$0x1] %vm198, %v197
    %s201 = scalar_lea.vmem %s1, 55
    %202 = vst.msk [vmem:[%s201] sm:$0x2] %vm198, %v197
    %v203 = vld [vmem:[#allocation0] sm:$0x3]
    %204 = vrot.lane.b32.xlu0 %v203, 103
    %v205 = vpop.permute.xlu0 %204
    %vm206 = vcmask 7168
    %s207 = scalar_lea.vmem %s1, 25
    %208 = vst.msk [vmem:[%s207] sm:$0x1] %vm206, %v205
    %s209 = scalar_lea.vmem %s1, 56
    %210 = vst.msk [vmem:[%s209] sm:$0x2] %vm206, %v205
    %v211 = vld [vmem:[#allocation0] sm:$0x3]
    %212 = vrot.lane.b32.xlu0 %v211, 102
    %v213 = vpop.permute.xlu0 %212
    %vm214 = vcmask 7168
    %s215 = scalar_lea.vmem %s1, 26
    %216 = vst.msk [vmem:[%s215] sm:$0x1] %vm214, %v213
    %s217 = scalar_lea.vmem %s1, 57
    %218 = vst.msk [vmem:[%s217] sm:$0x2] %vm214, %v213
    %v219 = vld [vmem:[#allocation0] sm:$0x3]
    %220 = vrot.lane.b32.xlu0 %v219, 101
    %v221 = vpop.permute.xlu0 %220
    %vm222 = vcmask 7168
    %s223 = scalar_lea.vmem %s1, 27
    %224 = vst.msk [vmem:[%s223] sm:$0x1] %vm222, %v221
    %s225 = scalar_lea.vmem %s1, 58
    %226 = vst.msk [vmem:[%s225] sm:$0x2] %vm222, %v221
    %v227 = vld [vmem:[#allocation0] sm:$0x3]
    %228 = vrot.lane.b32.xlu0 %v227, 100
    %v229 = vpop.permute.xlu0 %228
    %vm230 = vcmask 7168
    %s231 = scalar_lea.vmem %s1, 28
    %232 = vst.msk [vmem:[%s231] sm:$0x1] %vm230, %v229
    %s233 = scalar_lea.vmem %s1, 59
    %234 = vst.msk [vmem:[%s233] sm:$0x2] %vm230, %v229
    %v235 = vld [vmem:[#allocation0] sm:$0x3]
    %236 = vrot.lane.b32.xlu0 %v235, 99
    %v237 = vpop.permute.xlu0 %236
    %vm238 = vcmask 7168
    %s239 = scalar_lea.vmem %s1, 29
    %240 = vst.msk [vmem:[%s239] sm:$0x1] %vm238, %v237
    %s241 = scalar_lea.vmem %s1, 60
    %242 = vst.msk [vmem:[%s241] sm:$0x2] %vm238, %v237
    %v243 = vld [vmem:[#allocation0] sm:$0x3]
    %244 = vrot.lane.b32.xlu0 %v243, 98
    %v245 = vpop.permute.xlu0 %244
    %vm246 = vcmask 7168
    %s247 = scalar_lea.vmem %s1, 30
    %248 = vst.msk [vmem:[%s247] sm:$0x1] %vm246, %v245
    %s249 = scalar_lea.vmem %s1, 61
    %250 = vst.msk [vmem:[%s249] sm:$0x2] %vm246, %v245
    %v251 = vld [vmem:[#allocation0] sm:$0x3]
    %252 = vrot.lane.b32.xlu0 %v251, 97
    %v253 = vpop.permute.xlu0 %252
    %vm254 = vcmask 7168
    %s255 = scalar_lea.vmem %s1, 31
    %256 = vst.msk [vmem:[%s255] sm:$0x1] %vm254, %v253
    %s257 = scalar_lea.vmem %s1, 62
    %258 = vst.msk [vmem:[%s257] sm:$0x2] %vm254, %v253

// kernel: vector_quantization_forward.1
$region0: #{vector_quantization_forward.1}
  #allocation0 [shape = 'u32[]', space=smem, size = 0x4, offset = 0x4, fixed_abs, tag = 'smem constant byte address 0x4 - core index']
  #allocation1 [shape = 'u32[72,128]{1,0:T(1,128)}', space=vmem, size = 0x9000, scoped, tag = 'internal scratch']
  %s0 = inlined_call_operand.vmem [shape: f32[1,8,256], index: 0, kind: input, shape index: {}]
  %s1 = inlined_call_operand.vmem [shape: f32[64,8], index: 1, kind: input, shape index: {}]
  %s2 = inlined_call_operand.vmem [shape: f32[8,64], index: 2, kind: input, shape index: {}]
  %s3 = inlined_call_operand.vmem [shape: f32[64,1], index: 3, kind: input, shape index: {}]
  %s4 = inlined_call_operand.vmem [shape: f32[1,8,256], index: 4, kind: output, shape index: {0}]
  %s5 = inlined_call_operand.vmem [shape: s32[1,2,256], index: 5, kind: output, shape index: {1}]
  %s6 = inlined_call_operand.vmem [shape: f32[1,1,256], index: 6, kind: output, shape index: {2}]
  %7 = xla_tuple %s4, %s5, %s6
  %s8 = sld [smem:[#allocation0]]
  $region65: #{vector_quantization_forward.1} parent=0
    _
  %s10 = ssub.s32 1, %s8
  %s11 = scalar_select 0, %s10, %s8
  loop: start=0, step=1, limit=4
  $region2: #{vector_quantization_forward.1} parent=0 // loop_pre_header
    _
  $region3: #{vector_quantization_forward.1} parent=0 // loop_header
    %s13 = sphi 0, %s17
    %p14 = scmp.ge.s32.totalorder %s13, 4
    %s20 = sphi 0, %s32
    %s21 = sphi 0, %s28
    %s22 = sphi 0, %s20
    %s23 = sphi 0, %s21
    %s24 = sphi 0, %s22
    %s25 = sphi 0, %s23
    %s37 = sphi 0, %s39
    %s40 = sphi 0, %s37
    %s41 = sphi 0, %s40
    %s57 = sphi 0, %s41
    %s61 = sphi 0, %s61
    %s63 = sphi 0, %s61
    %s64 = sphi 0, %s63
    %s78 = sphi 0, %s64
    %s82 = sphi 0, %s82
    %s84 = sphi 0, %s82
    %s85 = sphi 0, %s84
    %s99 = sphi 0, %s85
    %s103 = sphi 0, %s103
    %s105 = sphi 0, %s103
    %s106 = sphi 0, %s105
    %s120 = sphi 0, %s106
    %s128 = sphi 0, %s130
    %s131 = sphi 0, %s128
    %s132 = sphi 0, %s131
    %s148 = sphi 0, %s132
    %s156 = sphi 0, %s158
    %s159 = sphi 0, %s156
    %s160 = sphi 0, %s159
    %s176 = sphi 0, %s160
    %s184 = sphi 0, %s186
    %s187 = sphi 0, %s184
    %s188 = sphi 0, %s187
    %s204 = sphi 0, %s188
  $region4: #{vector_quantization_forward.1} parent=0 // loop_header_branch
    %16 = sbr.rel (%p14) target = $region8
  $region5: #{vector_quantization_forward.1} parent=0 // loop_body
    %s18 = ssub.s32 %s13, 1
    %s19 = ssub.s32 %s13, 2
    %s26 = sadd.s32 1, %s21
    %p27 = scmp.ge.s32.totalorder %s26, 2
    %s28 = scalar_select %p27, 0, %s26
    %s29 = sadd.s32 1, %s20
    %s30 = scalar_select %p27, %s29, %s20
    %p31 = scmp.ge.s32.totalorder %s30, 1
    %s32 = scalar_select %p31, 0, %s30
    %s33 = ssub.s32 %s20, %s32
    %s34 = ssub.s32 %s21, %s28
    %s35 = sor.u32 %s33, %s34
    %p36 = scmp.eq.s32.totalorder %s35, 0
    %s38 = sadd.s32 %s37, 1
    %s39 = scalar_select %p36, %s37, %s38
    %p42 = pneg %p36
    %p43 = scmp.eq.s32.totalorder %s13, 1
    %p44 = por %p42, %p43
    %p45 = scmp.ne.s32.totalorder %s37, %s40
    %p46 = scmp.eq.s32.totalorder %s13, 0
    %p47 = por %p45, %p46
    %p48 = scmp.ne.s32.totalorder %s37, %s40
    %p49 = scmp.eq.s32.totalorder %s18, 1
    %p50 = por %p48, %p49
    %p51 = scmp.ne.s32.totalorder %s40, %s41
    %p52 = scmp.eq.s32.totalorder %s18, 0
    %p53 = por %p51, %p52
    %p54 = scmp.ne.s32.totalorder %s40, %s41
    %p55 = scmp.eq.s32.totalorder %s19, 1
    %p56 = por %p54, %p55
    %p58 = scmp.ne.s32.totalorder %s41, %s57
    %p59 = scmp.eq.s32.totalorder %s19, 0
    %p60 = por %p58, %p59
    %s62 = sadd.s32 %s61, 1
    %p65 = scmp.eq.s32.totalorder %s13, 1
    %p66 = scmp.ne.s32.totalorder %s61, %s63
    %p67 = scmp.eq.s32.totalorder %s13, 0
    %p68 = por %p66, %p67
    %p69 = scmp.ne.s32.totalorder %s61, %s63
    %p70 = scmp.eq.s32.totalorder %s18, 1
    %p71 = por %p69, %p70
    %p72 = scmp.ne.s32.totalorder %s63, %s64
    %p73 = scmp.eq.s32.totalorder %s18, 0
    %p74 = por %p72, %p73
    %p75 = scmp.ne.s32.totalorder %s63, %s64
    %p76 = scmp.eq.s32.totalorder %s19, 1
    %p77 = por %p75, %p76
    %p79 = scmp.ne.s32.totalorder %s64, %s78
    %p80 = scmp.eq.s32.totalorder %s19, 0
    %p81 = por %p79, %p80
    %s83 = sadd.s32 %s82, 1
    %p86 = scmp.eq.s32.totalorder %s13, 1
    %p87 = scmp.ne.s32.totalorder %s82, %s84
    %p88 = scmp.eq.s32.totalorder %s13, 0
    %p89 = por %p87, %p88
    %p90 = scmp.ne.s32.totalorder %s82, %s84
    %p91 = scmp.eq.s32.totalorder %s18, 1
    %p92 = por %p90, %p91
    %p93 = scmp.ne.s32.totalorder %s84, %s85
    %p94 = scmp.eq.s32.totalorder %s18, 0
    %p95 = por %p93, %p94
    %p96 = scmp.ne.s32.totalorder %s84, %s85
    %p97 = scmp.eq.s32.totalorder %s19, 1
    %p98 = por %p96, %p97
    %p100 = scmp.ne.s32.totalorder %s85, %s99
    %p101 = scmp.eq.s32.totalorder %s19, 0
    %p102 = por %p100, %p101
    %s104 = sadd.s32 %s103, 1
    %p107 = scmp.eq.s32.totalorder %s13, 1
    %p108 = scmp.ne.s32.totalorder %s103, %s105
    %p109 = scmp.eq.s32.totalorder %s13, 0
    %p110 = por %p108, %p109
    %p111 = scmp.ne.s32.totalorder %s103, %s105
    %p112 = scmp.eq.s32.totalorder %s18, 1
    %p113 = por %p111, %p112
    %p114 = scmp.ne.s32.totalorder %s105, %s106
    %p115 = scmp.eq.s32.totalorder %s18, 0
    %p116 = por %p114, %p115
    %p117 = scmp.ne.s32.totalorder %s105, %s106
    %p118 = scmp.eq.s32.totalorder %s19, 1
    %p119 = por %p117, %p118
    %p121 = scmp.ne.s32.totalorder %s106, %s120
    %p122 = scmp.eq.s32.totalorder %s19, 0
    %p123 = por %p121, %p122
    %s124 = ssub.s32 %s20, %s32
    %s125 = ssub.s32 %s21, %s28
    %s126 = sor.u32 %s124, %s125
    %p127 = scmp.eq.s32.totalorder %s126, 0
    %s129 = sadd.s32 %s128, 1
    %s130 = scalar_select %p127, %s128, %s129
    %p133 = pneg %p127
    %p134 = scmp.eq.s32.totalorder %s13, 1
    %p135 = por %p133, %p134
    %p136 = scmp.ne.s32.totalorder %s128, %s131
    %p137 = scmp.eq.s32.totalorder %s13, 0
    %p138 = por %p136, %p137
    %p139 = scmp.ne.s32.totalorder %s128, %s131
    %p140 = scmp.eq.s32.totalorder %s18, 1
    %p141 = por %p139, %p140
    %p142 = scmp.ne.s32.totalorder %s131, %s132
    %p143 = scmp.eq.s32.totalorder %s18, 0
    %p144 = por %p142, %p143
    %p145 = scmp.ne.s32.totalorder %s131, %s132
    %p146 = scmp.eq.s32.totalorder %s19, 1
    %p147 = por %p145, %p146
    %p149 = scmp.ne.s32.totalorder %s132, %s148
    %p150 = scmp.eq.s32.totalorder %s19, 0
    %p151 = por %p149, %p150
    %s152 = ssub.s32 %s20, %s32
    %s153 = ssub.s32 %s21, %s28
    %s154 = sor.u32 %s152, %s153
    %p155 = scmp.eq.s32.totalorder %s154, 0
    %s157 = sadd.s32 %s156, 1
    %s158 = scalar_select %p155, %s156, %s157
    %p161 = pneg %p155
    %p162 = scmp.eq.s32.totalorder %s13, 1
    %p163 = por %p161, %p162
    %p164 = scmp.ne.s32.totalorder %s156, %s159
    %p165 = scmp.eq.s32.totalorder %s13, 0
    %p166 = por %p164, %p165
    %p167 = scmp.ne.s32.totalorder %s156, %s159
    %p168 = scmp.eq.s32.totalorder %s18, 1
    %p169 = por %p167, %p168
    %p170 = scmp.ne.s32.totalorder %s159, %s160
    %p171 = scmp.eq.s32.totalorder %s18, 0
    %p172 = por %p170, %p171
    %p173 = scmp.ne.s32.totalorder %s159, %s160
    %p174 = scmp.eq.s32.totalorder %s19, 1
    %p175 = por %p173, %p174
    %p177 = scmp.ne.s32.totalorder %s160, %s176
    %p178 = scmp.eq.s32.totalorder %s19, 0
    %p179 = por %p177, %p178
    %s180 = ssub.s32 %s20, %s32
    %s181 = ssub.s32 %s21, %s28
    %s182 = sor.u32 %s180, %s181
    %p183 = scmp.eq.s32.totalorder %s182, 0
    %s185 = sadd.s32 %s184, 1
    %s186 = scalar_select %p183, %s184, %s185
    %p189 = pneg %p183
    %p190 = scmp.eq.s32.totalorder %s13, 1
    %p191 = por %p189, %p190
    %p192 = scmp.ne.s32.totalorder %s184, %s187
    %p193 = scmp.eq.s32.totalorder %s13, 0
    %p194 = por %p192, %p193
    %p195 = scmp.ne.s32.totalorder %s184, %s187
    %p196 = scmp.eq.s32.totalorder %s18, 1
    %p197 = por %p195, %p196
    %p198 = scmp.ne.s32.totalorder %s187, %s188
    %p199 = scmp.eq.s32.totalorder %s18, 0
    %p200 = por %p198, %p199
    %p201 = scmp.ne.s32.totalorder %s187, %s188
    %p202 = scmp.eq.s32.totalorder %s19, 1
    %p203 = por %p201, %p202
    %p205 = scmp.ne.s32.totalorder %s188, %s204
    %p206 = scmp.eq.s32.totalorder %s19, 0
    %p207 = por %p205, %p206
    %p208 = scmp.le.s32.totalorder 1, %s13
    %p209 = scmp.lt.s32.totalorder %s13, 3
    %p210 = pnand %p208, %p209
    %p211 = pneg %p210
    // Predicated region
    $region9: #{vector_quantization_forward.1} parent=5 // pred_check
      _
    $region10: #{vector_quantization_forward.1} parent=5 // pred_check_branch
      %213 = sbr.rel (%p210) target = $region12
    $region11: #{vector_quantization_forward.1} parent=5 // pred_region
      %s214 = ssub.s32 %s13, 1
      // Predicated region
      $region13: #{vector_quantization_forward.1} parent=11 // pred_check
        %p215 = pneg %p74
      $region14: #{vector_quantization_forward.1} parent=11 // pred_check_branch
        %217 = sbr.rel (%p215) target = $region16
      $region15: #{vector_quantization_forward.1} parent=11 // pred_region
        _
      $region16: #{vector_quantization_forward.1} parent=11 // pred_fallthru
        _
      // Predicated region
      $region17: #{vector_quantization_forward.1} parent=11 // pred_check
        %p218 = pneg %p95
      $region18: #{vector_quantization_forward.1} parent=11 // pred_check_branch
        %220 = sbr.rel (%p218) target = $region20
      $region19: #{vector_quantization_forward.1} parent=11 // pred_region
        _
      $region20: #{vector_quantization_forward.1} parent=11 // pred_fallthru
        _
      // Predicated region
      $region21: #{vector_quantization_forward.1} parent=11 // pred_check
        %p221 = pneg %p116
      $region22: #{vector_quantization_forward.1} parent=11 // pred_check_branch
        %223 = sbr.rel (%p221) target = $region24
      $region23: #{vector_quantization_forward.1} parent=11 // pred_region
        _
      $region24: #{vector_quantization_forward.1} parent=11 // pred_fallthru
        _
    $region12: #{vector_quantization_forward.1} parent=5 // pred_fallthru
      _
    %p224 = scmp.lt.s32.totalorder %s13, 2
    // Predicated region
    $region25: #{vector_quantization_forward.1} parent=5 // pred_check
      %p225 = pneg %p224
    $region26: #{vector_quantization_forward.1} parent=5 // pred_check_branch
      %227 = sbr.rel (%p225) target = $region28
    $region27: #{vector_quantization_forward.1} parent=5 // pred_region
      // Predicated region
      $region29: #{vector_quantization_forward.1} parent=27 // pred_check
        %p228 = pneg %p47
      $region30: #{vector_quantization_forward.1} parent=27 // pred_check_branch
        %230 = sbr.rel (%p228) target = $region32
      $region31: #{vector_quantization_forward.1} parent=27 // pred_region
        %p231 = scmp.lt.s32.totalorder %s20, 0
        %s232 = scalar_select %p231, %s20, 0
        %p233 = scmp.lt.s32.totalorder %s21, 1
        %s234 = scalar_select %p233, %s21, 1
        %s235 = smul.addr %s232, 2
        %s236 = sadd.s32 %s234, %s235
        %s237 = smul.addr %s236, 8
        %s238 = scalar_lea.vmem %s0, %s237
      $region32: #{vector_quantization_forward.1} parent=27 // pred_fallthru
        _
    $region28: #{vector_quantization_forward.1} parent=5 // pred_fallthru
      _
    %p239 = scmp.le.s32.totalorder 1, %s13
    %p240 = scmp.lt.s32.totalorder %s13, 3
    %p241 = pnand %p239, %p240
    %p242 = pneg %p241
    // Predicated region
    $region33: #{vector_quantization_forward.1} parent=5 // pred_check
      _
    $region34: #{vector_quantization_forward.1} parent=5 // pred_check_branch
      %244 = sbr.rel (%p241) target = $region36
    $region35: #{vector_quantization_forward.1} parent=5 // pred_region
      %s245 = ssub.s32 %s13, 1
      %p246 = scmp.lt.s32.totalorder %s22, 0
      %s247 = scalar_select %p246, %s22, 0
      %p248 = scmp.lt.s32.totalorder %s23, 1
      %s249 = scalar_select %p248, %s23, 1
      %s250 = smul.addr %s247, 2
      %s251 = sadd.s32 %s249, %s250
      %s252 = smul.addr %s251, 8
      %s253 = scalar_lea.vmem %s0, %s252
      %p254 = pneg %p53
      %p255 = pneg %p50
      %p256 = pneg %p74
      %p257 = pneg %p71
      %p258 = pneg %p95
      %p259 = pneg %p92
      %p260 = pneg %p116
      %p261 = pneg %p113
      %p262 = pneg %p144
      %p263 = pneg %p141
      %p264 = scmp.lt.s32.totalorder %s22, 0
      %s265 = scalar_select %p264, %s22, 0
      %p266 = scmp.lt.s32.totalorder %s23, 1
      %s267 = scalar_select %p266, %s23, 1
      %s268 = smul.addr %s265, 2
      %s269 = sadd.s32 %s267, %s268
      %s270 = smul.addr %s269, 8
      %s271 = scalar_lea.vmem %s4, %s270
      %p272 = pneg %p172
      %p273 = pneg %p169
      %p274 = scmp.lt.s32.totalorder %s22, 0
      %s275 = scalar_select %p274, %s22, 0
      %p276 = scmp.lt.s32.totalorder %s23, 1
      %s277 = scalar_select %p276, %s23, 1
      %s278 = smul.addr %s275, 2
      %s279 = sadd.s32 %s277, %s278
      %s280 = smul.addr %s279, 2
      %s281 = scalar_lea.vmem %s5, %s280
      %p282 = pneg %p200
      %p283 = pneg %p197
      %p284 = scmp.lt.s32.totalorder %s22, 0
      %s285 = scalar_select %p284, %s22, 0
      %p286 = scmp.lt.s32.totalorder %s23, 1
      %s287 = scalar_select %p286, %s23, 1
      %s288 = smul.addr %s285, 2
      %s289 = sadd.s32 %s287, %s288
      %s290 = scalar_lea.vmem %s6, %s289
      %p291 = scmp.lt.s32.totalorder %s22, 0
      %s292 = scalar_select %p291, %s22, 0
      %p293 = scmp.lt.s32.totalorder %s23, 1
      %s294 = scalar_select %p293, %s23, 1
      %s295 = smul.addr %s292, 2
      %s296 = sadd.s32 %s294, %s295
      %s297 = smul.addr %s296, 8
      %s298 = scalar_lea.vmem %s0, %s297
      %p299 = scmp.lt.s32.totalorder %s22, 0
      %s300 = scalar_select %p299, %s22, 0
      %p301 = scmp.lt.s32.totalorder %s23, 1
      %s302 = scalar_select %p301, %s23, 1
      %s303 = smul.addr %s300, 2
      %s304 = sadd.s32 %s302, %s303
      %s305 = smul.addr %s304, 8
      %s306 = scalar_lea.vmem %s4, %s305
      %p307 = scmp.lt.s32.totalorder %s22, 0
      %s308 = scalar_select %p307, %s22, 0
      %p309 = scmp.lt.s32.totalorder %s23, 1
      %s310 = scalar_select %p309, %s23, 1
      %s311 = smul.addr %s308, 2
      %s312 = sadd.s32 %s310, %s311
      %s313 = smul.addr %s312, 2
      %s314 = scalar_lea.vmem %s5, %s313
      %p315 = scmp.lt.s32.totalorder %s22, 0
      %s316 = scalar_select %p315, %s22, 0
      %p317 = scmp.lt.s32.totalorder %s23, 1
      %s318 = scalar_select %p317, %s23, 1
      %s319 = smul.addr %s316, 2
      %s320 = sadd.s32 %s318, %s319
      %s321 = scalar_lea.vmem %s6, %s320
      %v322 = vld [vmem:[%s1] sm:$0xff]
      %v323 = vld [vmem:[%s1 + $0x8] sm:$0xff]
      %v324 = vld [vmem:[%s1 + $0x10] sm:$0xff]
      %v325 = vld [vmem:[%s1 + $0x18] sm:$0xff]
      %v326 = vld [vmem:[%s1 + $0x20] sm:$0xff]
      %v327 = vld [vmem:[%s1 + $0x28] sm:$0xff]
      %v328 = vld [vmem:[%s1 + $0x30] sm:$0xff]
      %v329 = vld [vmem:[%s1 + $0x38] sm:$0xff]
      %v330 = vld [vmem:[%s2] sm:$0xff]
      %v331 = vld [vmem:[%s3] sm:$0xff]
      %v332 = vld [vmem:[%s3 + $0x8] sm:$0xff]
      %v333 = vld [vmem:[%s3 + $0x10] sm:$0xff]
      %v334 = vld [vmem:[%s3 + $0x18] sm:$0xff]
      %v335 = vld [vmem:[%s3 + $0x20] sm:$0xff]
      %v336 = vld [vmem:[%s3 + $0x28] sm:$0xff]
      %v337 = vld [vmem:[%s3 + $0x30] sm:$0xff]
      %v338 = vld [vmem:[%s3 + $0x38] sm:$0xff]
      %v339 = vld [vmem:[%s298] sm:$0xff]
      %341 = vset.pattern.permute.xlu0 0
      %342 = vperm.xlu0 %341, %v331
      %v343 = vpop.permute.xlu0 %342
      %346 = vset.pattern.permute.xlu0 0
      %347 = vperm.xlu0 %346, %v332
      %v348 = vpop.permute.xlu0 %347
      %351 = vset.pattern.permute.xlu0 0
      %352 = vperm.xlu0 %351, %v333
      %v353 = vpop.permute.xlu0 %352
      %356 = vset.pattern.permute.xlu0 0
      %357 = vperm.xlu0 %356, %v334
      %v358 = vpop.permute.xlu0 %357
      %361 = vset.pattern.permute.xlu0 0
      %362 = vperm.xlu0 %361, %v335
      %v363 = vpop.permute.xlu0 %362
      %366 = vset.pattern.permute.xlu0 0
      %367 = vperm.xlu0 %366, %v336
      %v368 = vpop.permute.xlu0 %367
      %371 = vset.pattern.permute.xlu0 0
      %372 = vperm.xlu0 %371, %v337
      %v373 = vpop.permute.xlu0 %372
      %376 = vset.pattern.permute.xlu0 0
      %377 = vperm.xlu0 %376, %v338
      %v378 = vpop.permute.xlu0 %377
      %vm380 = vcmask 64512
      %v382 = vsel %vm380, %v322, 0
      %v385 = vsel %vm380, %v323, 0
      %v388 = vsel %vm380, %v324, 0
      %v391 = vsel %vm380, %v325, 0
      %v394 = vsel %vm380, %v326, 0
      %v397 = vsel %vm380, %v327, 0
      %v400 = vsel %vm380, %v328, 0
      %v403 = vsel %vm380, %v329, 0
      %405 = vmatpush.msra.mxu0 0.0
      %406 = vmatpush.msra.mxu0 0.0
      %407 = vmatpush.msra.mxu0 0.0
      %408 = vmatpush.msra.mxu0 0.0
      %409 = vmatpush.msra.mxu0 0.0
      %410 = vmatpush.msra.mxu0 0.0
      %411 = vmatpush.msra.mxu0 0.0
      %412 = vmatpush.msra.mxu0 0.0
      %413 = vmatpush.msra.mxu0 0.0
      %414 = vmatpush.msra.mxu0 0.0
      %415 = vmatpush.msra.mxu0 0.0
      %416 = vmatpush.msra.mxu0 0.0
      %417 = vmatpush.msra.mxu0 0.0
      %418 = vmatpush.msra.mxu0 0.0
      %419 = vmatpush.msra.mxu0 0.0
      %v420 = vand.u32 %v339, 4294901760
      %421 = vmatpush.msra.mxu0 %v420
      %v422 = vand.u32 %v382, 4294901760
      %v423 = vsub.f32 %v382, %v422
      %v424 = vand.u32 %v423, 4294901760
      %v425 = vsub.f32 %v423, %v424
      %v426 = vand.u32 %v425, 4294901760
      %427 = vmatmul.f32.gmra.mxu0 %v426
      %v428 = vpop.f32.mrf.mxu0
      %v429 = vadd.f32 %v343, %v428
      %v430 = vand.u32 %v385, 4294901760
      %v431 = vsub.f32 %v385, %v430
      %v432 = vand.u32 %v431, 4294901760
      %v433 = vsub.f32 %v431, %v432
      %v434 = vand.u32 %v433, 4294901760
      %435 = vmatmul.f32.gmra.mxu0 %v434
      %v436 = vpop.f32.mrf.mxu0
      %v437 = vadd.f32 %v348, %v436
      %v438 = vand.u32 %v388, 4294901760
      %v439 = vsub.f32 %v388, %v438
      %v440 = vand.u32 %v439, 4294901760
      %v441 = vsub.f32 %v439, %v440
      %v442 = vand.u32 %v441, 4294901760
      %443 = vmatmul.f32.gmra.mxu0 %v442
      %v444 = vpop.f32.mrf.mxu0
      %v445 = vadd.f32 %v353, %v444
      %v446 = vand.u32 %v391, 4294901760
      %v447 = vsub.f32 %v391, %v446
      %v448 = vand.u32 %v447, 4294901760
      %v449 = vsub.f32 %v447, %v448
      %v450 = vand.u32 %v449, 4294901760
      %451 = vmatmul.f32.gmra.mxu0 %v450
      %v452 = vpop.f32.mrf.mxu0
      %v453 = vadd.f32 %v358, %v452
      %v454 = vand.u32 %v394, 4294901760
      %v455 = vsub.f32 %v394, %v454
      %v456 = vand.u32 %v455, 4294901760
      %v457 = vsub.f32 %v455, %v456
      %v458 = vand.u32 %v457, 4294901760
      %459 = vmatmul.f32.gmra.mxu0 %v458
      %v460 = vpop.f32.mrf.mxu0
      %v461 = vadd.f32 %v363, %v460
      %v462 = vand.u32 %v397, 4294901760
      %v463 = vsub.f32 %v397, %v462
      %v464 = vand.u32 %v463, 4294901760
      %v465 = vsub.f32 %v463, %v464
      %v466 = vand.u32 %v465, 4294901760
      %467 = vmatmul.f32.gmra.mxu0 %v466
      %v468 = vpop.f32.mrf.mxu0
      %v469 = vadd.f32 %v368, %v468
      %v470 = vand.u32 %v400, 4294901760
      %v471 = vsub.f32 %v400, %v470
      %v472 = vand.u32 %v471, 4294901760
      %v473 = vsub.f32 %v471, %v472
      %v474 = vand.u32 %v473, 4294901760
      %475 = vmatmul.f32.gmra.mxu0 %v474
      %v476 = vpop.f32.mrf.mxu0
      %v477 = vadd.f32 %v373, %v476
      %v478 = vand.u32 %v403, 4294901760
      %v479 = vsub.f32 %v403, %v478
      %v480 = vand.u32 %v479, 4294901760
      %v481 = vsub.f32 %v479, %v480
      %v482 = vand.u32 %v481, 4294901760
      %483 = vmatmul.f32.gmra.mxu0 %v482
      %v484 = vpop.f32.mrf.mxu0
      %v485 = vadd.f32 %v378, %v484
      %486 = vdwg.mxu0
      %487 = vmatpush.msra.mxu0 0.0
      %488 = vmatpush.msra.mxu0 0.0
      %489 = vmatpush.msra.mxu0 0.0
      %490 = vmatpush.msra.mxu0 0.0
      %491 = vmatpush.msra.mxu0 0.0
      %492 = vmatpush.msra.mxu0 0.0
      %493 = vmatpush.msra.mxu0 0.0
      %494 = vmatpush.msra.mxu0 0.0
      %495 = vmatpush.msra.mxu0 0.0
      %496 = vmatpush.msra.mxu0 0.0
      %497 = vmatpush.msra.mxu0 0.0
      %498 = vmatpush.msra.mxu0 0.0
      %499 = vmatpush.msra.mxu0 0.0
      %500 = vmatpush.msra.mxu0 0.0
      %501 = vmatpush.msra.mxu0 0.0
      %v502 = vand.u32 %v339, 4294901760
      %v503 = vsub.f32 %v339, %v502
      %v504 = vand.u32 %v503, 4294901760
      %v505 = vsub.f32 %v503, %v504
      %v506 = vand.u32 %v505, 4294901760
      %507 = vmatpush.msra.mxu0 %v506
      %v508 = vand.u32 %v382, 4294901760
      %509 = vmatmul.f32.gmra.mxu0 %v508
      %v510 = vpop.f32.mrf.mxu0
      %v511 = vadd.f32 %v429, %v510
      %v512 = vand.u32 %v385, 4294901760
      %513 = vmatmul.f32.gmra.mxu0 %v512
      %v514 = vpop.f32.mrf.mxu0
      %v515 = vadd.f32 %v437, %v514
      %v516 = vand.u32 %v388, 4294901760
      %517 = vmatmul.f32.gmra.mxu0 %v516
      %v518 = vpop.f32.mrf.mxu0
      %v519 = vadd.f32 %v445, %v518
      %v520 = vand.u32 %v391, 4294901760
      %521 = vmatmul.f32.gmra.mxu0 %v520
      %v522 = vpop.f32.mrf.mxu0
      %v523 = vadd.f32 %v453, %v522
      %v524 = vand.u32 %v394, 4294901760
      %525 = vmatmul.f32.gmra.mxu0 %v524
      %v526 = vpop.f32.mrf.mxu0
      %v527 = vadd.f32 %v461, %v526
      %v528 = vand.u32 %v397, 4294901760
      %529 = vmatmul.f32.gmra.mxu0 %v528
      %v530 = vpop.f32.mrf.mxu0
      %v531 = vadd.f32 %v469, %v530
      %v532 = vand.u32 %v400, 4294901760
      %533 = vmatmul.f32.gmra.mxu0 %v532
      %v534 = vpop.f32.mrf.mxu0
      %v535 = vadd.f32 %v477, %v534
      %v536 = vand.u32 %v403, 4294901760
      %537 = vmatmul.f32.gmra.mxu0 %v536
      %v538 = vpop.f32.mrf.mxu0
      %v539 = vadd.f32 %v485, %v538
      %540 = vdwg.mxu0
      %541 = vmatpush.msra.mxu0 0.0
      %542 = vmatpush.msra.mxu0 0.0
      %543 = vmatpush.msra.mxu0 0.0
      %544 = vmatpush.msra.mxu0 0.0
      %545 = vmatpush.msra.mxu0 0.0
      %546 = vmatpush.msra.mxu0 0.0
      %547 = vmatpush.msra.mxu0 0.0
      %548 = vmatpush.msra.mxu0 0.0
      %549 = vmatpush.msra.mxu0 0.0
      %550 = vmatpush.msra.mxu0 0.0
      %551 = vmatpush.msra.mxu0 0.0
      %552 = vmatpush.msra.mxu0 0.0
      %553 = vmatpush.msra.mxu0 0.0
      %554 = vmatpush.msra.mxu0 0.0
      %555 = vmatpush.msra.mxu0 0.0
      %v556 = vand.u32 %v339, 4294901760
      %v557 = vsub.f32 %v339, %v556
      %558 = vmatpush.msra.mxu0 %v557
      %v559 = vand.u32 %v382, 4294901760
      %v560 = vsub.f32 %v382, %v559
      %561 = vmatmul.f32.gmra.mxu0 %v560
      %v562 = vpop.f32.mrf.mxu0
      %v563 = vadd.f32 %v511, %v562
      %v564 = vand.u32 %v385, 4294901760
      %v565 = vsub.f32 %v385, %v564
      %566 = vmatmul.f32.gmra.mxu0 %v565
      %v567 = vpop.f32.mrf.mxu0
      %v568 = vadd.f32 %v515, %v567
      %v569 = vand.u32 %v388, 4294901760
      %v570 = vsub.f32 %v388, %v569
      %571 = vmatmul.f32.gmra.mxu0 %v570
      %v572 = vpop.f32.mrf.mxu0
      %v573 = vadd.f32 %v519, %v572
      %v574 = vand.u32 %v391, 4294901760
      %v575 = vsub.f32 %v391, %v574
      %576 = vmatmul.f32.gmra.mxu0 %v575
      %v577 = vpop.f32.mrf.mxu0
      %v578 = vadd.f32 %v523, %v577
      %v579 = vand.u32 %v394, 4294901760
      %v580 = vsub.f32 %v394, %v579
      %581 = vmatmul.f32.gmra.mxu0 %v580
      %v582 = vpop.f32.mrf.mxu0
      %v583 = vadd.f32 %v527, %v582
      %v584 = vand.u32 %v397, 4294901760
      %v585 = vsub.f32 %v397, %v584
      %586 = vmatmul.f32.gmra.mxu0 %v585
      %v587 = vpop.f32.mrf.mxu0
      %v588 = vadd.f32 %v531, %v587
      %v589 = vand.u32 %v400, 4294901760
      %v590 = vsub.f32 %v400, %v589
      %591 = vmatmul.f32.gmra.mxu0 %v590
      %v592 = vpop.f32.mrf.mxu0
      %v593 = vadd.f32 %v535, %v592
      %v594 = vand.u32 %v403, 4294901760
      %v595 = vsub.f32 %v403, %v594
      %596 = vmatmul.f32.gmra.mxu0 %v595
      %v597 = vpop.f32.mrf.mxu0
      %v598 = vadd.f32 %v539, %v597
      %599 = vdwg.mxu0
      %600 = vmatpush.msra.mxu0 0.0
      %601 = vmatpush.msra.mxu0 0.0
      %602 = vmatpush.msra.mxu0 0.0
      %603 = vmatpush.msra.mxu0 0.0
      %604 = vmatpush.msra.mxu0 0.0
      %605 = vmatpush.msra.mxu0 0.0
      %606 = vmatpush.msra.mxu0 0.0
      %607 = vmatpush.msra.mxu0 0.0
      %608 = vmatpush.msra.mxu0 0.0
      %609 = vmatpush.msra.mxu0 0.0
      %610 = vmatpush.msra.mxu0 0.0
      %611 = vmatpush.msra.mxu0 0.0
      %612 = vmatpush.msra.mxu0 0.0
      %613 = vmatpush.msra.mxu0 0.0
      %614 = vmatpush.msra.mxu0 0.0
      %v615 = vand.u32 %v339, 4294901760
      %616 = vmatpush.msra.mxu0 %v615
      %v617 = vand.u32 %v382, 4294901760
      %v618 = vsub.f32 %v382, %v617
      %v619 = vand.u32 %v618, 4294901760
      %620 = vmatmul.f32.gmra.mxu0 %v619
      %v621 = vpop.f32.mrf.mxu0
      %v622 = vadd.f32 %v563, %v621
      %v623 = vand.u32 %v385, 4294901760
      %v624 = vsub.f32 %v385, %v623
      %v625 = vand.u32 %v624, 4294901760
      %626 = vmatmul.f32.gmra.mxu0 %v625
      %v627 = vpop.f32.mrf.mxu0
      %v628 = vadd.f32 %v568, %v627
      %v629 = vand.u32 %v388, 4294901760
      %v630 = vsub.f32 %v388, %v629
      %v631 = vand.u32 %v630, 4294901760
      %632 = vmatmul.f32.gmra.mxu0 %v631
      %v633 = vpop.f32.mrf.mxu0
      %v634 = vadd.f32 %v573, %v633
      %v635 = vand.u32 %v391, 4294901760
      %v636 = vsub.f32 %v391, %v635
      %v637 = vand.u32 %v636, 4294901760
      %638 = vmatmul.f32.gmra.mxu0 %v637
      %v639 = vpop.f32.mrf.mxu0
      %v640 = vadd.f32 %v578, %v639
      %v641 = vand.u32 %v394, 4294901760
      %v642 = vsub.f32 %v394, %v641
      %v643 = vand.u32 %v642, 4294901760
      %644 = vmatmul.f32.gmra.mxu0 %v643
      %v645 = vpop.f32.mrf.mxu0
      %v646 = vadd.f32 %v583, %v645
      %v647 = vand.u32 %v397, 4294901760
      %v648 = vsub.f32 %v397, %v647
      %v649 = vand.u32 %v648, 4294901760
      %650 = vmatmul.f32.gmra.mxu0 %v649
      %v651 = vpop.f32.mrf.mxu0
      %v652 = vadd.f32 %v588, %v651
      %v653 = vand.u32 %v400, 4294901760
      %v654 = vsub.f32 %v400, %v653
      %v655 = vand.u32 %v654, 4294901760
      %656 = vmatmul.f32.gmra.mxu0 %v655
      %v657 = vpop.f32.mrf.mxu0
      %v658 = vadd.f32 %v593, %v657
      %v659 = vand.u32 %v403, 4294901760
      %v660 = vsub.f32 %v403, %v659
      %v661 = vand.u32 %v660, 4294901760
      %662 = vmatmul.f32.gmra.mxu0 %v661
      %v663 = vpop.f32.mrf.mxu0
      %v664 = vadd.f32 %v598, %v663
      %665 = vdwg.mxu0
      %666 = vmatpush.msra.mxu0 0.0
      %667 = vmatpush.msra.mxu0 0.0
      %668 = vmatpush.msra.mxu0 0.0
      %669 = vmatpush.msra.mxu0 0.0
      %670 = vmatpush.msra.mxu0 0.0
      %671 = vmatpush.msra.mxu0 0.0
      %672 = vmatpush.msra.mxu0 0.0
      %673 = vmatpush.msra.mxu0 0.0
      %674 = vmatpush.msra.mxu0 0.0
      %675 = vmatpush.msra.mxu0 0.0
      %676 = vmatpush.msra.mxu0 0.0
      %677 = vmatpush.msra.mxu0 0.0
      %678 = vmatpush.msra.mxu0 0.0
      %679 = vmatpush.msra.mxu0 0.0
      %680 = vmatpush.msra.mxu0 0.0
      %v681 = vand.u32 %v339, 4294901760
      %v682 = vsub.f32 %v339, %v681
      %v683 = vand.u32 %v682, 4294901760
      %684 = vmatpush.msra.mxu0 %v683
      %v685 = vand.u32 %v382, 4294901760
      %686 = vmatmul.f32.gmra.mxu0 %v685
      %v687 = vpop.f32.mrf.mxu0
      %v688 = vadd.f32 %v622, %v687
      %v689 = vand.u32 %v385, 4294901760
      %690 = vmatmul.f32.gmra.mxu0 %v689
      %v691 = vpop.f32.mrf.mxu0
      %v692 = vadd.f32 %v628, %v691
      %v693 = vand.u32 %v388, 4294901760
      %694 = vmatmul.f32.gmra.mxu0 %v693
      %v695 = vpop.f32.mrf.mxu0
      %v696 = vadd.f32 %v634, %v695
      %v697 = vand.u32 %v391, 4294901760
      %698 = vmatmul.f32.gmra.mxu0 %v697
      %v699 = vpop.f32.mrf.mxu0
      %v700 = vadd.f32 %v640, %v699
      %v701 = vand.u32 %v394, 4294901760
      %702 = vmatmul.f32.gmra.mxu0 %v701
      %v703 = vpop.f32.mrf.mxu0
      %v704 = vadd.f32 %v646, %v703
      %v705 = vand.u32 %v397, 4294901760
      %706 = vmatmul.f32.gmra.mxu0 %v705
      %v707 = vpop.f32.mrf.mxu0
      %v708 = vadd.f32 %v652, %v707
      %v709 = vand.u32 %v400, 4294901760
      %710 = vmatmul.f32.gmra.mxu0 %v709
      %v711 = vpop.f32.mrf.mxu0
      %v712 = vadd.f32 %v658, %v711
      %v713 = vand.u32 %v403, 4294901760
      %714 = vmatmul.f32.gmra.mxu0 %v713
      %v715 = vpop.f32.mrf.mxu0
      %v716 = vadd.f32 %v664, %v715
      %717 = vdwg.mxu0
      %718 = vmatpush.msra.mxu0 0.0
      %719 = vmatpush.msra.mxu0 0.0
      %720 = vmatpush.msra.mxu0 0.0
      %721 = vmatpush.msra.mxu0 0.0
      %722 = vmatpush.msra.mxu0 0.0
      %723 = vmatpush.msra.mxu0 0.0
      %724 = vmatpush.msra.mxu0 0.0
      %725 = vmatpush.msra.mxu0 0.0
      %726 = vmatpush.msra.mxu0 0.0
      %727 = vmatpush.msra.mxu0 0.0
      %728 = vmatpush.msra.mxu0 0.0
      %729 = vmatpush.msra.mxu0 0.0
      %730 = vmatpush.msra.mxu0 0.0
      %731 = vmatpush.msra.mxu0 0.0
      %732 = vmatpush.msra.mxu0 0.0
      %v733 = vand.u32 %v339, 4294901760
      %734 = vmatpush.msra.mxu0 %v733
      %v735 = vand.u32 %v382, 4294901760
      %736 = vmatmul.f32.gmra.mxu0 %v735
      %v737 = vpop.f32.mrf.mxu0
      %v738 = vadd.f32 %v688, %v737
      %v739 = vand.u32 %v385, 4294901760
      %740 = vmatmul.f32.gmra.mxu0 %v739
      %v741 = vpop.f32.mrf.mxu0
      %v742 = vadd.f32 %v692, %v741
      %v743 = vand.u32 %v388, 4294901760
      %744 = vmatmul.f32.gmra.mxu0 %v743
      %v745 = vpop.f32.mrf.mxu0
      %v746 = vadd.f32 %v696, %v745
      %v747 = vand.u32 %v391, 4294901760
      %748 = vmatmul.f32.gmra.mxu0 %v747
      %v749 = vpop.f32.mrf.mxu0
      %v750 = vadd.f32 %v700, %v749
      %v751 = vand.u32 %v394, 4294901760
      %752 = vmatmul.f32.gmra.mxu0 %v751
      %v753 = vpop.f32.mrf.mxu0
      %v754 = vadd.f32 %v704, %v753
      %v755 = vand.u32 %v397, 4294901760
      %756 = vmatmul.f32.gmra.mxu0 %v755
      %v757 = vpop.f32.mrf.mxu0
      %v758 = vadd.f32 %v708, %v757
      %v759 = vand.u32 %v400, 4294901760
      %760 = vmatmul.f32.gmra.mxu0 %v759
      %v761 = vpop.f32.mrf.mxu0
      %v762 = vadd.f32 %v712, %v761
      %v763 = vand.u32 %v403, 4294901760
      %764 = vmatmul.f32.gmra.mxu0 %v763
      %v765 = vpop.f32.mrf.mxu0
      %v766 = vadd.f32 %v716, %v765
      %767 = vdwg.mxu0
      %v768 = vmin.f32 %v738, %v746
      %v769 = vmin.f32 %v742, %v750
      %v770 = vmin.f32 %v768, %v769
      %v771 = vrot.slane %v770, 4
      %v772 = vmin.f32 %v770, %v771
      %v773 = vrot.slane %v772, 2
      %v774 = vmin.f32 %v772, %v773
      %v775 = vrot.slane %v774, 1
      %v776 = vmin.f32 %v774, %v775
      %v777 = vmin.f32 %v754, %v762
      %v778 = vmin.f32 %v758, %v766
      %v779 = vmin.f32 %v777, %v778
      %v780 = vrot.slane %v779, 4
      %v781 = vmin.f32 %v779, %v780
      %v782 = vrot.slane %v781, 2
      %v783 = vmin.f32 %v781, %v782
      %v784 = vrot.slane %v783, 1
      %v785 = vmin.f32 %v783, %v784
      %v786 = vlaneseq
      %v787 = vshrl.u32 %v786, 7
      %v788 = vadd.s32 %v787, 8
      %v789 = vadd.s32 %v787, 16
      %v790 = vadd.s32 %v787, 24
      %vm791 = vcmp.eq.f32.partialorder %v738, %v776
      %vm792 = vcmp.eq.f32.partialorder %v742, %v776
      %vm793 = vcmp.eq.f32.partialorder %v746, %v776
      %vm794 = vcmp.eq.f32.partialorder %v750, %v776
      %vm795 = vcmp.eq.f32.partialorder %v754, %v785
      %vm796 = vcmp.eq.f32.partialorder %v758, %v785
      %vm797 = vcmp.eq.f32.partialorder %v762, %v785
      %vm798 = vcmp.eq.f32.partialorder %v766, %v785
      %v799 = vsel %vm791, %v787, 32
      %v800 = vsel %vm792, %v788, 32
      %v801 = vsel %vm793, %v789, 32
      %v802 = vsel %vm794, %v790, 32
      %v803 = vsel %vm795, %v787, 32
      %v804 = vsel %vm796, %v788, 32
      %v805 = vsel %vm797, %v789, 32
      %v806 = vsel %vm798, %v790, 32
      %vm807 = vcmp.lt.s32.totalorder %v799, %v801
      %v808 = vsel %vm807, %v799, %v801
      %vm809 = vcmp.lt.s32.totalorder %v800, %v802
      %v810 = vsel %vm809, %v800, %v802
      %vm811 = vcmp.lt.s32.totalorder %v808, %v810
      %v812 = vsel %vm811, %v808, %v810
      %v813 = vrot.slane %v812, 4
      %vm814 = vcmp.lt.s32.totalorder %v812, %v813
      %v815 = vsel %vm814, %v812, %v813
      %v816 = vrot.slane %v815, 2
      %vm817 = vcmp.lt.s32.totalorder %v815, %v816
      %v818 = vsel %vm817, %v815, %v816
      %v819 = vrot.slane %v818, 1
      %vm820 = vcmp.lt.s32.totalorder %v818, %v819
      %v821 = vsel %vm820, %v818, %v819
      %vm822 = vcmp.lt.s32.totalorder %v803, %v805
      %v823 = vsel %vm822, %v803, %v805
      %vm824 = vcmp.lt.s32.totalorder %v804, %v806
      %v825 = vsel %vm824, %v804, %v806
      %vm826 = vcmp.lt.s32.totalorder %v823, %v825
      %v827 = vsel %vm826, %v823, %v825
      %v828 = vrot.slane %v827, 4
      %vm829 = vcmp.lt.s32.totalorder %v827, %v828
      %v830 = vsel %vm829, %v827, %v828
      %v831 = vrot.slane %v830, 2
      %vm832 = vcmp.lt.s32.totalorder %v830, %v831
      %v833 = vsel %vm832, %v830, %v831
      %v834 = vrot.slane %v833, 1
      %vm835 = vcmp.lt.s32.totalorder %v833, %v834
      %v836 = vsel %vm835, %v833, %v834
      %vm837 = vcmp.eq.s32.totalorder %v787, %v821
      %vm838 = vcmp.eq.s32.totalorder %v788, %v821
      %vm839 = vcmp.eq.s32.totalorder %v789, %v821
      %vm840 = vcmp.eq.s32.totalorder %v790, %v821
      %vm841 = vcmp.eq.s32.totalorder %v787, %v836
      %vm842 = vcmp.eq.s32.totalorder %v788, %v836
      %vm843 = vcmp.eq.s32.totalorder %v789, %v836
      %vm844 = vcmp.eq.s32.totalorder %v790, %v836
      %v845 = vsel %vm837, 1, 0
      %v846 = vsel %vm838, 1, 0
      %v847 = vsel %vm839, 1, 0
      %v848 = vsel %vm840, 1, 0
      %v849 = vsel %vm841, 1, 0
      %v850 = vsel %vm842, 1, 0
      %v851 = vsel %vm843, 1, 0
      %v852 = vsel %vm844, 1, 0
      %v853 = vcvt.s32.f32 %v845
      %v854 = vcvt.s32.f32 %v846
      %v855 = vcvt.s32.f32 %v847
      %v856 = vcvt.s32.f32 %v848
      %v857 = vcvt.s32.f32 %v849
      %v858 = vcvt.s32.f32 %v850
      %v859 = vcvt.s32.f32 %v851
      %v860 = vcvt.s32.f32 %v852
      %vm861 = vcmask 523264
      %v863 = vsel %vm861, %v330, 0
      %865 = vmatpush.msra.mxu0 0.0
      %866 = vmatpush.msra.mxu0 0.0
      %867 = vmatpush.msra.mxu0 0.0
      %868 = vmatpush.msra.mxu0 0.0
      %869 = vmatpush.msra.mxu0 0.0
      %870 = vmatpush.msra.mxu0 0.0
      %871 = vmatpush.msra.mxu0 0.0
      %872 = vmatpush.msra.mxu0 0.0
      %v873 = vand.u32 %v860, 4294901760
      %874 = vmatpush.msra.mxu0 %v873
      %v875 = vand.u32 %v859, 4294901760
      %876 = vmatpush.msra.mxu0 %v875
      %v877 = vand.u32 %v858, 4294901760
      %878 = vmatpush.msra.mxu0 %v877
      %v879 = vand.u32 %v857, 4294901760
      %880 = vmatpush.msra.mxu0 %v879
      %v881 = vand.u32 %v856, 4294901760
      %882 = vmatpush.msra.mxu0 %v881
      %v883 = vand.u32 %v855, 4294901760
      %884 = vmatpush.msra.mxu0 %v883
      %v885 = vand.u32 %v854, 4294901760
      %886 = vmatpush.msra.mxu0 %v885
      %v887 = vand.u32 %v853, 4294901760
      %888 = vmatpush.msra.mxu0 %v887
      %v889 = vand.u32 %v863, 4294901760
      %v890 = vsub.f32 %v863, %v889
      %v891 = vand.u32 %v890, 4294901760
      %v892 = vsub.f32 %v890, %v891
      %v893 = vand.u32 %v892, 4294901760
      %894 = vmatmul.f32.gmra.mxu0 %v893
      %v895 = vpop.f32.mrf.mxu0
      %v896 = vadd.f32 0.0, %v895
      %897 = vdwg.mxu0
      %898 = vmatpush.msra.mxu0 0.0
      %899 = vmatpush.msra.mxu0 0.0
      %900 = vmatpush.msra.mxu0 0.0
      %901 = vmatpush.msra.mxu0 0.0
      %902 = vmatpush.msra.mxu0 0.0
      %903 = vmatpush.msra.mxu0 0.0
      %904 = vmatpush.msra.mxu0 0.0
      %905 = vmatpush.msra.mxu0 0.0
      %v906 = vand.u32 %v860, 4294901760
      %v907 = vsub.f32 %v860, %v906
      %v908 = vand.u32 %v907, 4294901760
      %v909 = vsub.f32 %v907, %v908
      %v910 = vand.u32 %v909, 4294901760
      %911 = vmatpush.msra.mxu0 %v910
      %v912 = vand.u32 %v859, 4294901760
      %v913 = vsub.f32 %v859, %v912
      %v914 = vand.u32 %v913, 4294901760
      %v915 = vsub.f32 %v913, %v914
      %v916 = vand.u32 %v915, 4294901760
      %917 = vmatpush.msra.mxu0 %v916
      %v918 = vand.u32 %v858, 4294901760
      %v919 = vsub.f32 %v858, %v918
      %v920 = vand.u32 %v919, 4294901760
      %v921 = vsub.f32 %v919, %v920
      %v922 = vand.u32 %v921, 4294901760
      %923 = vmatpush.msra.mxu0 %v922
      %v924 = vand.u32 %v857, 4294901760
      %v925 = vsub.f32 %v857, %v924
      %v926 = vand.u32 %v925, 4294901760
      %v927 = vsub.f32 %v925, %v926
      %v928 = vand.u32 %v927, 4294901760
      %929 = vmatpush.msra.mxu0 %v928
      %v930 = vand.u32 %v856, 4294901760
      %v931 = vsub.f32 %v856, %v930
      %v932 = vand.u32 %v931, 4294901760
      %v933 = vsub.f32 %v931, %v932
      %v934 = vand.u32 %v933, 4294901760
      %935 = vmatpush.msra.mxu0 %v934
      %v936 = vand.u32 %v855, 4294901760
      %v937 = vsub.f32 %v855, %v936
      %v938 = vand.u32 %v937, 4294901760
      %v939 = vsub.f32 %v937, %v938
      %v940 = vand.u32 %v939, 4294901760
      %941 = vmatpush.msra.mxu0 %v940
      %v942 = vand.u32 %v854, 4294901760
      %v943 = vsub.f32 %v854, %v942
      %v944 = vand.u32 %v943, 4294901760
      %v945 = vsub.f32 %v943, %v944
      %v946 = vand.u32 %v945, 4294901760
      %947 = vmatpush.msra.mxu0 %v946
      %v948 = vand.u32 %v853, 4294901760
      %v949 = vsub.f32 %v853, %v948
      %v950 = vand.u32 %v949, 4294901760
      %v951 = vsub.f32 %v949, %v950
      %v952 = vand.u32 %v951, 4294901760
      %953 = vmatpush.msra.mxu0 %v952
      %v954 = vand.u32 %v863, 4294901760
      %955 = vmatmul.f32.gmra.mxu0 %v954
      %v956 = vpop.f32.mrf.mxu0
      %v957 = vadd.f32 %v896, %v956
      %958 = vdwg.mxu0
      %959 = vmatpush.msra.mxu0 0.0
      %960 = vmatpush.msra.mxu0 0.0
      %961 = vmatpush.msra.mxu0 0.0
      %962 = vmatpush.msra.mxu0 0.0
      %963 = vmatpush.msra.mxu0 0.0
      %964 = vmatpush.msra.mxu0 0.0
      %965 = vmatpush.msra.mxu0 0.0
      %966 = vmatpush.msra.mxu0 0.0
      %v967 = vand.u32 %v860, 4294901760
      %v968 = vsub.f32 %v860, %v967
      %969 = vmatpush.msra.mxu0 %v968
      %v970 = vand.u32 %v859, 4294901760
      %v971 = vsub.f32 %v859, %v970
      %972 = vmatpush.msra.mxu0 %v971
      %v973 = vand.u32 %v858, 4294901760
      %v974 = vsub.f32 %v858, %v973
      %975 = vmatpush.msra.mxu0 %v974
      %v976 = vand.u32 %v857, 4294901760
      %v977 = vsub.f32 %v857, %v976
      %978 = vmatpush.msra.mxu0 %v977
      %v979 = vand.u32 %v856, 4294901760
      %v980 = vsub.f32 %v856, %v979
      %981 = vmatpush.msra.mxu0 %v980
      %v982 = vand.u32 %v855, 4294901760
      %v983 = vsub.f32 %v855, %v982
      %984 = vmatpush.msra.mxu0 %v983
      %v985 = vand.u32 %v854, 4294901760
      %v986 = vsub.f32 %v854, %v985
      %987 = vmatpush.msra.mxu0 %v986
      %v988 = vand.u32 %v853, 4294901760
      %v989 = vsub.f32 %v853, %v988
      %990 = vmatpush.msra.mxu0 %v989
      %v991 = vand.u32 %v863, 4294901760
      %v992 = vsub.f32 %v863, %v991
      %993 = vmatmul.f32.gmra.mxu0 %v992
      %v994 = vpop.f32.mrf.mxu0
      %v995 = vadd.f32 %v957, %v994
      %996 = vdwg.mxu0
      %997 = vmatpush.msra.mxu0 0.0
      %998 = vmatpush.msra.mxu0 0.0
      %999 = vmatpush.msra.mxu0 0.0
      %1000 = vmatpush.msra.mxu0 0.0
      %1001 = vmatpush.msra.mxu0 0.0
      %1002 = vmatpush.msra.mxu0 0.0
      %1003 = vmatpush.msra.mxu0 0.0
      %1004 = vmatpush.msra.mxu0 0.0
      %v1005 = vand.u32 %v860, 4294901760
      %1006 = vmatpush.msra.mxu0 %v1005
      %v1007 = vand.u32 %v859, 4294901760
      %1008 = vmatpush.msra.mxu0 %v1007
      %v1009 = vand.u32 %v858, 4294901760
      %1010 = vmatpush.msra.mxu0 %v1009
      %v1011 = vand.u32 %v857, 4294901760
      %1012 = vmatpush.msra.mxu0 %v1011
      %v1013 = vand.u32 %v856, 4294901760
      %1014 = vmatpush.msra.mxu0 %v1013
      %v1015 = vand.u32 %v855, 4294901760
      %1016 = vmatpush.msra.mxu0 %v1015
      %v1017 = vand.u32 %v854, 4294901760
      %1018 = vmatpush.msra.mxu0 %v1017
      %v1019 = vand.u32 %v853, 4294901760
      %1020 = vmatpush.msra.mxu0 %v1019
      %v1021 = vand.u32 %v863, 4294901760
      %v1022 = vsub.f32 %v863, %v1021
      %v1023 = vand.u32 %v1022, 4294901760
      %1024 = vmatmul.f32.gmra.mxu0 %v1023
      %v1025 = vpop.f32.mrf.mxu0
      %v1026 = vadd.f32 %v995, %v1025
      %1027 = vdwg.mxu0
      %1028 = vmatpush.msra.mxu0 0.0
      %1029 = vmatpush.msra.mxu0 0.0
      %1030 = vmatpush.msra.mxu0 0.0
      %1031 = vmatpush.msra.mxu0 0.0
      %1032 = vmatpush.msra.mxu0 0.0
      %1033 = vmatpush.msra.mxu0 0.0
      %1034 = vmatpush.msra.mxu0 0.0
      %1035 = vmatpush.msra.mxu0 0.0
      %v1036 = vand.u32 %v860, 4294901760
      %v1037 = vsub.f32 %v860, %v1036
      %v1038 = vand.u32 %v1037, 4294901760
      %1039 = vmatpush.msra.mxu0 %v1038
      %v1040 = vand.u32 %v859, 4294901760
      %v1041 = vsub.f32 %v859, %v1040
      %v1042 = vand.u32 %v1041, 4294901760
      %1043 = vmatpush.msra.mxu0 %v1042
      %v1044 = vand.u32 %v858, 4294901760
      %v1045 = vsub.f32 %v858, %v1044
      %v1046 = vand.u32 %v1045, 4294901760
      %1047 = vmatpush.msra.mxu0 %v1046
      %v1048 = vand.u32 %v857, 4294901760
      %v1049 = vsub.f32 %v857, %v1048
      %v1050 = vand.u32 %v1049, 4294901760
      %1051 = vmatpush.msra.mxu0 %v1050
      %v1052 = vand.u32 %v856, 4294901760
      %v1053 = vsub.f32 %v856, %v1052
      %v1054 = vand.u32 %v1053, 4294901760
      %1055 = vmatpush.msra.mxu0 %v1054
      %v1056 = vand.u32 %v855, 4294901760
      %v1057 = vsub.f32 %v855, %v1056
      %v1058 = vand.u32 %v1057, 4294901760
      %1059 = vmatpush.msra.mxu0 %v1058
      %v1060 = vand.u32 %v854, 4294901760
      %v1061 = vsub.f32 %v854, %v1060
      %v1062 = vand.u32 %v1061, 4294901760
      %1063 = vmatpush.msra.mxu0 %v1062
      %v1064 = vand.u32 %v853, 4294901760
      %v1065 = vsub.f32 %v853, %v1064
      %v1066 = vand.u32 %v1065, 4294901760
      %1067 = vmatpush.msra.mxu0 %v1066
      %v1068 = vand.u32 %v863, 4294901760
      %1069 = vmatmul.f32.gmra.mxu0 %v1068
      %v1070 = vpop.f32.mrf.mxu0
      %v1071 = vadd.f32 %v1026, %v1070
      %1072 = vdwg.mxu0
      %1073 = vmatpush.msra.mxu0 0.0
      %1074 = vmatpush.msra.mxu0 0.0
      %1075 = vmatpush.msra.mxu0 0.0
      %1076 = vmatpush.msra.mxu0 0.0
      %1077 = vmatpush.msra.mxu0 0.0
      %1078 = vmatpush.msra.mxu0 0.0
      %1079 = vmatpush.msra.mxu0 0.0
      %1080 = vmatpush.msra.mxu0 0.0
      %v1081 = vand.u32 %v860, 4294901760
      %1082 = vmatpush.msra.mxu0 %v1081
      %v1083 = vand.u32 %v859, 4294901760
      %1084 = vmatpush.msra.mxu0 %v1083
      %v1085 = vand.u32 %v858, 4294901760
      %1086 = vmatpush.msra.mxu0 %v1085
      %v1087 = vand.u32 %v857, 4294901760
      %1088 = vmatpush.msra.mxu0 %v1087
      %v1089 = vand.u32 %v856, 4294901760
      %1090 = vmatpush.msra.mxu0 %v1089
      %v1091 = vand.u32 %v855, 4294901760
      %1092 = vmatpush.msra.mxu0 %v1091
      %v1093 = vand.u32 %v854, 4294901760
      %1094 = vmatpush.msra.mxu0 %v1093
      %v1095 = vand.u32 %v853, 4294901760
      %1096 = vmatpush.msra.mxu0 %v1095
      %v1097 = vand.u32 %v863, 4294901760
      %1098 = vmatmul.f32.gmra.mxu0 %v1097
      %v1099 = vpop.f32.mrf.mxu0
      %v1100 = vadd.f32 %v1071, %v1099
      %1101 = vdwg.mxu0
      %1102 = vst [vmem:[%s306] sm:$0xff] %v1100
      %vm1103 = vcmask 1041409
      %v1104 = vsel %vm1103, %v836, %v821
      %1105 = vst [vmem:[%s314] sm:$0x3] %v1104
      %v1106 = vsub.f32 %v1100, %v339
      %v1107 = vmul.f32 %v1106, %v1106
      %v1108 = vrot.slane %v1107, 4
      %v1109 = vadd.f32 %v1107, %v1108
      %v1110 = vrot.slane %v1109, 2
      %v1111 = vadd.f32 %v1109, %v1110
      %v1112 = vrot.slane %v1111, 1
      %v1113 = vadd.f32 %v1111, %v1112
      %1114 = vst [vmem:[%s321] sm:$0x1] %v1113
      %p1115 = scmp.lt.s32.totalorder %s22, 0
      %s1116 = scalar_select %p1115, %s22, 0
      %p1117 = scmp.lt.s32.totalorder %s23, 1
      %s1118 = scalar_select %p1117, %s23, 1
      %s1119 = smul.addr %s1116, 2
      %s1120 = sadd.s32 %s1118, %s1119
      %s1121 = smul.addr %s1120, 8
      %s1122 = scalar_lea.vmem %s4, %s1121
      %p1123 = scmp.lt.s32.totalorder %s22, 0
      %s1124 = scalar_select %p1123, %s22, 0
      %p1125 = scmp.lt.s32.totalorder %s23, 1
      %s1126 = scalar_select %p1125, %s23, 1
      %s1127 = smul.addr %s1124, 2
      %s1128 = sadd.s32 %s1126, %s1127
      %s1129 = smul.addr %s1128, 2
      %s1130 = scalar_lea.vmem %s5, %s1129
      %p1131 = scmp.lt.s32.totalorder %s22, 0
      %s1132 = scalar_select %p1131, %s22, 0
      %p1133 = scmp.lt.s32.totalorder %s23, 1
      %s1134 = scalar_select %p1133, %s23, 1
      %s1135 = smul.addr %s1132, 2
      %s1136 = sadd.s32 %s1134, %s1135
      %s1137 = scalar_lea.vmem %s6, %s1136
      // Predicated region
      $region37: #{vector_quantization_forward.1} parent=35 // pred_check
        %p1138 = pneg %p141
      $region38: #{vector_quantization_forward.1} parent=35 // pred_check_branch
        %1140 = sbr.rel (%p1138) target = $region40
      $region39: #{vector_quantization_forward.1} parent=35 // pred_region
        _
      $region40: #{vector_quantization_forward.1} parent=35 // pred_fallthru
        _
      // Predicated region
      $region41: #{vector_quantization_forward.1} parent=35 // pred_check
        %p1141 = pneg %p169
      $region42: #{vector_quantization_forward.1} parent=35 // pred_check_branch
        %1143 = sbr.rel (%p1141) target = $region44
      $region43: #{vector_quantization_forward.1} parent=35 // pred_region
        _
      $region44: #{vector_quantization_forward.1} parent=35 // pred_fallthru
        _
      // Predicated region
      $region45: #{vector_quantization_forward.1} parent=35 // pred_check
        %p1144 = pneg %p197
      $region46: #{vector_quantization_forward.1} parent=35 // pred_check_branch
        %1146 = sbr.rel (%p1144) target = $region48
      $region47: #{vector_quantization_forward.1} parent=35 // pred_region
        _
      $region48: #{vector_quantization_forward.1} parent=35 // pred_fallthru
        _
    $region36: #{vector_quantization_forward.1} parent=5 // pred_fallthru
      _
    %p1147 = scmp.le.s32.totalorder 2, %s13
    // Predicated region
    $region49: #{vector_quantization_forward.1} parent=5 // pred_check
      %p1148 = pneg %p1147
    $region50: #{vector_quantization_forward.1} parent=5 // pred_check_branch
      %1150 = sbr.rel (%p1148) target = $region52
    $region51: #{vector_quantization_forward.1} parent=5 // pred_region
      %s1151 = ssub.s32 %s13, 2
      // Predicated region
      $region53: #{vector_quantization_forward.1} parent=51 // pred_check
        %p1152 = pneg %p147
      $region54: #{vector_quantization_forward.1} parent=51 // pred_check_branch
        %1154 = sbr.rel (%p1152) target = $region56
      $region55: #{vector_quantization_forward.1} parent=51 // pred_region
        %p1155 = scmp.lt.s32.totalorder %s24, 0
        %s1156 = scalar_select %p1155, %s24, 0
        %p1157 = scmp.lt.s32.totalorder %s25, 1
        %s1158 = scalar_select %p1157, %s25, 1
        %s1159 = smul.addr %s1156, 2
        %s1160 = sadd.s32 %s1158, %s1159
        %s1161 = smul.addr %s1160, 8
        %s1162 = scalar_lea.vmem %s4, %s1161
      $region56: #{vector_quantization_forward.1} parent=51 // pred_fallthru
        _
      // Predicated region
      $region57: #{vector_quantization_forward.1} parent=51 // pred_check
        %p1163 = pneg %p175
      $region58: #{vector_quantization_forward.1} parent=51 // pred_check_branch
        %1165 = sbr.rel (%p1163) target = $region60
      $region59: #{vector_quantization_forward.1} parent=51 // pred_region
        %p1166 = scmp.lt.s32.totalorder %s24, 0
        %s1167 = scalar_select %p1166, %s24, 0
        %p1168 = scmp.lt.s32.totalorder %s25, 1
        %s1169 = scalar_select %p1168, %s25, 1
        %s1170 = smul.addr %s1167, 2
        %s1171 = sadd.s32 %s1169, %s1170
        %s1172 = smul.addr %s1171, 2
        %s1173 = scalar_lea.vmem %s5, %s1172
      $region60: #{vector_quantization_forward.1} parent=51 // pred_fallthru
        _
      // Predicated region
      $region61: #{vector_quantization_forward.1} parent=51 // pred_check
        %p1174 = pneg %p203
      $region62: #{vector_quantization_forward.1} parent=51 // pred_check_branch
        %1176 = sbr.rel (%p1174) target = $region64
      $region63: #{vector_quantization_forward.1} parent=51 // pred_region
        %p1177 = scmp.lt.s32.totalorder %s24, 0
        %s1178 = scalar_select %p1177, %s24, 0
        %p1179 = scmp.lt.s32.totalorder %s25, 1
        %s1180 = scalar_select %p1179, %s25, 1
        %s1181 = smul.addr %s1178, 2
        %s1182 = sadd.s32 %s1180, %s1181
        %s1183 = scalar_lea.vmem %s6, %s1182
      $region64: #{vector_quantization_forward.1} parent=51 // pred_fallthru
        _
    $region52: #{vector_quantization_forward.1} parent=5 // pred_fallthru
      _
  $region6: #{vector_quantization_forward.1} parent=0 // loop_footer
    %s17 = sadd.s32 1, %s13
  $region7: #{vector_quantization_forward.1} parent=0 // loop_footer_branch
    %12 = sbr.rel target = $region3
  $region8: #{vector_quantization_forward.1} parent=0 // loop_exit
    _

</llo_original>
